<compile_context>
chip_gen: v6e
topology: v6e:2x2x1
jax: 0.10.0
libtpu: 0.0.40
codegen_flags: <defaults>
</compile_context>

<pallas_src>
import functools
import math

import jax
import jax.numpy as jnp
from jax.experimental import pallas as pl
from jax.experimental.pallas import tpu as pltpu

N_VIS_TOKENS = 36   # the "+36" in the wrapper's output reshape
VIS_PAD = 40        # 36 rounded up to a sublane (8) multiple


def _vis_proj_kernel(vin_ref, wfp_ref, out_ref):
    # One image per grid step: (VIS_PAD, fdim+pdim) @ (fdim+pdim, d).
    out_ref[0] = jnp.dot(
        vin_ref[0], wfp_ref[...],
        preferred_element_type=jnp.float32).astype(out_ref.dtype)


def _encoder_kernel(text_ref, vis_ref, mask_ref,
                    wqkv_ref, wo_ref, w1_ref, w2_ref, out_ref):
    # One (image, block-of-P-passages) per grid step.
    _, P, L, d = text_ref.shape
    text = text_ref[0]                                   # (P, L, d)      bf16
    vis = vis_ref[0]                                     # (VIS_PAD, d)   bf16 (shared by the P passages)
    vis_b = jnp.broadcast_to(vis[None], (P, vis.shape[0], d))
    h = jnp.concatenate([text, vis_b], axis=1)           # (P, S, d) bf16, S = L + VIS_PAD
    S = h.shape[1]
    mask = mask_ref[0]                                   # (P, 1, S) f32, 1 = keep

    # ---- fused QKV projection on the flattened token axis (M = P*S) ----
    h2 = h.reshape(P * S, d)
    qkv = jnp.dot(h2, wqkv_ref[...], preferred_element_type=jnp.float32)
    qkv = qkv.reshape(P, S, 3 * d)
    q = qkv[..., :d].astype(jnp.bfloat16)
    k = qkv[..., d:2 * d].astype(jnp.bfloat16)
    v = qkv[..., 2 * d:].astype(jnp.bfloat16)

    # ---- masked single-head self-attention, batched over the P passages ----
    scores = jnp.einsum('pqd,pkd->pqk', q, k,
                        preferred_element_type=jnp.float32)      # (P, S, S)
    scores = scores * (1.0 / math.sqrt(d))
    scores = scores + (1.0 - mask) * (-1e9)                      # key mask
    scores = scores - jnp.max(scores, axis=-1, keepdims=True)
    p = jnp.exp(scores)
    p = p * pl.reciprocal(jnp.sum(p, axis=-1, keepdims=True), approx=True)
    attn = jnp.einsum('pqk,pkd->pqd', p.astype(jnp.bfloat16), v,
                      preferred_element_type=jnp.float32)        # (P, S, d)

    h_f32 = h2.astype(jnp.float32)
    attn2 = attn.reshape(P * S, d).astype(jnp.bfloat16)
    h_f32 = h_f32 + jnp.dot(attn2, wo_ref[...],
                            preferred_element_type=jnp.float32)

    # ---- ReLU feed-forward, again with M = P*S ----
    ff_in = h_f32.astype(jnp.bfloat16)
    ff = jnp.maximum(
        jnp.dot(ff_in, w1_ref[...], preferred_element_type=jnp.float32), 0.0)
    h_f32 = h_f32 + jnp.dot(ff.astype(jnp.bfloat16), w2_ref[...],
                            preferred_element_type=jnp.float32)

    out_ref[0] = h_f32.reshape(P, S, d).astype(out_ref.dtype)


def encoder_wrapper_forward(input_ids, attention_mask, vis_inputs,
                            vis_attention_mask, params, n_passages,
                            passages_per_block=None):
    """Mirrors EncoderWrapper.forward (with a synthetic single-layer encoder)."""
    emb_table, wf, wp, wq, wk, wv, wo, w1, w2 = params
    bsz, total_length = input_ids.shape
    assert total_length % n_passages == 0, "total_length must divide by n_passages"
    L = total_length // n_passages
    d = emb_table.shape[1]
    S_out = L + N_VIS_TOKENS
    S_pad = L + VIS_PAD

    P = n_passages if passages_per_block is None else passages_per_block
    assert n_passages % P == 0
    n_pblocks = n_passages // P

    # ---- glue outside the kernels: views, embedding gather, casts, weight fusion ----
    ids = input_ids.reshape(bsz, n_passages, L)
    text_emb = jnp.take(emb_table.astype(jnp.bfloat16), ids, axis=0)   # (bsz, n_passages, L, d)

    tmask = attention_mask.reshape(bsz, n_passages, 1, L).astype(jnp.float32)
    vmask = vis_attention_mask.astype(jnp.float32)                     # (bsz, 36)
    vmask = jnp.pad(vmask, ((0, 0), (0, VIS_PAD - N_VIS_TOKENS)))      # pad tokens masked out
    vmask = jnp.broadcast_to(vmask[:, None, None, :],
                             (bsz, n_passages, 1, VIS_PAD))
    mask_full = jnp.concatenate([tmask, vmask], axis=-1)               # (bsz, n_passages, 1, S_pad)

    vis_feats, vis_pos = vis_inputs                                    # (bsz, 36, fdim/pdim)
    fin = vis_feats.shape[-1] + vis_pos.shape[-1]
    vin = jnp.concatenate([vis_feats, vis_pos], axis=-1)               # (bsz, 36, fin)
    vin = jnp.pad(vin, ((0, 0), (0, VIS_PAD - N_VIS_TOKENS), (0, 0)))
    vin = vin.astype(jnp.bfloat16)
    wfp = jnp.concatenate([wf, wp], axis=0).astype(jnp.bfloat16)       # fused Wf|Wp  (fin, d)

    wqkv = jnp.concatenate([wq, wk, wv], axis=1).astype(jnp.bfloat16)  # fused Wq|Wk|Wv (d, 3d)
    wo_b = wo.astype(jnp.bfloat16)
    w1_b = w1.astype(jnp.bfloat16)
    w2_b = w2.astype(jnp.bfloat16)
    ffd = w1.shape[-1]

    vmem_limit = 64 * 1024 * 1024

    # ---- vision projection: once per image (hoisted out of the passage loop) ----
    vis_emb = pl.pallas_call(
        _vis_proj_kernel,
        out_shape=jax.ShapeDtypeStruct((bsz, VIS_PAD, d), jnp.bfloat16),
        grid_spec=pltpu.PrefetchScalarGridSpec(
            num_scalar_prefetch=0,
            grid=(bsz,),
            in_specs=[pl.BlockSpec((1, VIS_PAD, fin), lambda b: (b, 0, 0)),
                      pl.BlockSpec((fin, d), lambda b: (0, 0))],
            out_specs=pl.BlockSpec((1, VIS_PAD, d), lambda b: (b, 0, 0))),
        compiler_params=pltpu.CompilerParams(
            dimension_semantics=("parallel",),
            vmem_limit_bytes=vmem_limit),
    )(vin, wfp)

    # ---- main encoder kernel: grid over (image, block of P passages) ----
    per_block4 = lambda b, j: (b, j, 0, 0)
    per_image3 = lambda b, j: (b, 0, 0)       # repeat_interleave via index_map
    whole_2d = lambda b, j: (0, 0)

    out = pl.pallas_call(
        _encoder_kernel,
        out_shape=jax.ShapeDtypeStruct((bsz, n_passages, S_pad, d), jnp.bfloat16),
        grid_spec=pltpu.PrefetchScalarGridSpec(
            num_scalar_prefetch=0,
            grid=(bsz, n_pblocks),
            in_specs=[
                pl.BlockSpec((1, P, L, d), per_block4),        # text embeddings
                pl.BlockSpec((1, VIS_PAD, d), per_image3),     # shared vision embeddings
                pl.BlockSpec((1, P, 1, S_pad), per_block4),    # combined attention mask
                pl.BlockSpec((d, 3 * d), whole_2d),            # fused Wq|Wk|Wv
                pl.BlockSpec((d, d), whole_2d),                # Wo
                pl.BlockSpec((d, ffd), whole_2d),              # W1
                pl.BlockSpec((ffd, d), whole_2d),              # W2
            ],
            out_specs=pl.BlockSpec((1, P, S_pad, d), per_block4)),
        compiler_params=pltpu.CompilerParams(
            dimension_semantics=("parallel", "parallel"),
            vmem_limit_bytes=vmem_limit),
    )(text_emb, vis_emb, mask_full, wqkv, wo_b, w1_b, w2_b)

    # ---- final view: (bsz, n_passages * (L + 36), d); drop the alignment pad ----
    last_hidden_state = out[:, :, :S_out, :].reshape(bsz, n_passages * S_out, d)
    return last_hidden_state


def _init_params(key, vocab, d, fdim, pdim, ff):
    ks = jax.random.split(key, 9)

    def w(k, shape, scale=0.05):
        return (scale * jax.random.normal(k, shape)).astype(jnp.float32)

    emb_table = w(ks[0], (vocab, d))
    wf = w(ks[1], (fdim, d))
    wp = w(ks[2], (pdim, d))
    wq = w(ks[3], (d, d))
    wk = w(ks[4], (d, d))
    wv = w(ks[5], (d, d))
    wo = w(ks[6], (d, d))
    w1 = w(ks[7], (d, ff))
    w2 = w(ks[8], (ff, d))
    return (emb_table, wf, wp, wq, wk, wv, wo, w1, w2)


if __name__ == "__main__":
    # small deterministic shapes
    bsz = 2
    n_passages = 2
    passage_length = 8
    total_length = n_passages * passage_length        # 16
    vocab, d, fdim, pdim, ff = 100, 32, 16, 4, 64

    key = jax.random.PRNGKey(0)
    k_ids, k_vf, k_vp, k_params = jax.random.split(key, 4)

    input_ids = jax.random.randint(k_ids, (bsz, total_length), 0, vocab,
                                   dtype=jnp.int32)
    attention_mask = jnp.ones((bsz, total_length), dtype=jnp.int32)
    vis_feats = jax.random.normal(k_vf, (bsz, N_VIS_TOKENS, fdim),
                                  dtype=jnp.float32)
    vis_pos = jax.random.normal(k_vp, (bsz, N_VIS_TOKENS, pdim),
                                dtype=jnp.float32)
    vis_attention_mask = jnp.ones((bsz, N_VIS_TOKENS), dtype=jnp.int32)

    params = _init_params(k_params, vocab, d, fdim, pdim, ff)

    fwd = jax.jit(functools.partial(encoder_wrapper_forward,
                                    n_passages=n_passages))
    last_hidden_state = fwd(input_ids, attention_mask, (vis_feats, vis_pos),
                            vis_attention_mask, params)
    jax.block_until_ready(last_hidden_state)

    expected = (bsz, n_passages * (passage_length + N_VIS_TOKENS), d)
    assert last_hidden_state.shape == expected, (last_hidden_state.shape, expected)
    print("KERNEL_OK")
</pallas_src>

<mosaic_0001>
module attributes {stable_mosaic.version = 11 : i64} {
  func.func @_encoder_kernel(%arg0: i32, %arg1: i32, %arg2: memref<1x2x8x32xbf16, #tpu.memory_space<vmem>>, %arg3: memref<1x40x32xbf16, #tpu.memory_space<vmem>>, %arg4: memref<1x2x1x48xf32, #tpu.memory_space<vmem>>, %arg5: memref<32x96xbf16, #tpu.memory_space<vmem>>, %arg6: memref<32x32xbf16, #tpu.memory_space<vmem>>, %arg7: memref<32x64xbf16, #tpu.memory_space<vmem>>, %arg8: memref<64x32xbf16, #tpu.memory_space<vmem>>, %arg9: memref<1x2x48x32xbf16, #tpu.memory_space<vmem>>) attributes {dimension_semantics = [#tpu.dimension_semantics<parallel>, #tpu.dimension_semantics<parallel>], iteration_bounds = array<i64: 2, 1>, scalar_prefetch = 0 : i64, scratch_operands = 0 : i64, tpu.core_type = #tpu.core_type<tc>, window_params = [{transform_indices = @transform_0, window_bounds = array<i64: 1, 2, 8, 32>}, {transform_indices = @transform_1, window_bounds = array<i64: 1, 40, 32>}, {transform_indices = @transform_2, window_bounds = array<i64: 1, 2, 1, 48>}, {pipeline_mode = #tpu.pipeline_mode<synchronous>, transform_indices = @transform_3, window_bounds = array<i64: 32, 96>}, {pipeline_mode = #tpu.pipeline_mode<synchronous>, transform_indices = @transform_4, window_bounds = array<i64: 32, 32>}, {pipeline_mode = #tpu.pipeline_mode<synchronous>, transform_indices = @transform_5, window_bounds = array<i64: 32, 64>}, {pipeline_mode = #tpu.pipeline_mode<synchronous>, transform_indices = @transform_6, window_bounds = array<i64: 64, 32>}, {transform_indices = @transform_7, window_bounds = array<i64: 1, 2, 48, 32>}]} {
    %c0 = arith.constant 0 : index
    %c0_0 = arith.constant 0 : index
    %c0_1 = arith.constant 0 : index
    %c0_2 = arith.constant 0 : index
    %0 = vector.load %arg2[%c0, %c0_0, %c0_1, %c0_2] : memref<1x2x8x32xbf16, #tpu.memory_space<vmem>>, vector<1x2x8x32xbf16>
    %1 = vector.shape_cast %0 : vector<1x2x8x32xbf16> to vector<2x8x32xbf16>
    %c0_3 = arith.constant 0 : index
    %c0_4 = arith.constant 0 : index
    %c0_5 = arith.constant 0 : index
    %2 = vector.load %arg3[%c0_3, %c0_4, %c0_5] : memref<1x40x32xbf16, #tpu.memory_space<vmem>>, vector<1x40x32xbf16>
    %3 = vector.shape_cast %2 : vector<1x40x32xbf16> to vector<40x32xbf16>
    %4 = vector.shape_cast %3 : vector<40x32xbf16> to vector<1x40x32xbf16>
    %5 = vector.shape_cast %4 : vector<1x40x32xbf16> to vector<1x40x32xbf16>
    %6 = vector.broadcast %5 : vector<1x40x32xbf16> to vector<2x40x32xbf16>
    %7 = tpu.concatenate %1, %6 in 1 : vector<2x8x32xbf16>, vector<2x40x32xbf16> -> vector<2x48x32xbf16>
    %c0_6 = arith.constant 0 : index
    %c0_7 = arith.constant 0 : index
    %c0_8 = arith.constant 0 : index
    %c0_9 = arith.constant 0 : index
    %8 = vector.load %arg4[%c0_6, %c0_7, %c0_8, %c0_9] : memref<1x2x1x48xf32, #tpu.memory_space<vmem>>, vector<1x2x1x48xf32>
    %9 = vector.shape_cast %8 : vector<1x2x1x48xf32> to vector<2x1x48xf32>
    %10 = vector.shape_cast %7 : vector<2x48x32xbf16> to vector<96x32xbf16>
    %c0_10 = arith.constant 0 : index
    %c0_11 = arith.constant 0 : index
    %11 = vector.load %arg5[%c0_10, %c0_11] : memref<32x96xbf16, #tpu.memory_space<vmem>>, vector<32x96xbf16>
    %cst = arith.constant dense<0.000000e+00> : vector<96x96xf32>
    %12 = tpu.matmul %10, %11, %cst {dimension_numbers = #tpu.dot_dimension_numbers<[1], [0], [0], [1], [0, 0, 1, 1], [], []>} : vector<96x32xbf16>, vector<32x96xbf16>, vector<96x96xf32> -> vector<96x96xf32>
    %13 = vector.shape_cast %12 : vector<96x96xf32> to vector<2x48x96xf32>
    %14 = vector.extract_strided_slice %13 {offsets = [0, 0, 0], sizes = [2, 48, 32], strides = [1, 1, 1]} : vector<2x48x96xf32> to vector<2x48x32xf32>
    %15 = arith.truncf %14 : vector<2x48x32xf32> to vector<2x48x32xbf16>
    %16 = vector.extract_strided_slice %13 {offsets = [0, 0, 32], sizes = [2, 48, 32], strides = [1, 1, 1]} : vector<2x48x96xf32> to vector<2x48x32xf32>
    %17 = arith.truncf %16 : vector<2x48x32xf32> to vector<2x48x32xbf16>
    %18 = vector.extract_strided_slice %13 {offsets = [0, 0, 64], sizes = [2, 48, 32], strides = [1, 1, 1]} : vector<2x48x96xf32> to vector<2x48x32xf32>
    %19 = arith.truncf %18 : vector<2x48x32xf32> to vector<2x48x32xbf16>
    "tpu.trace_start"() <{level = 10 : i32, message = "pqd,pkd->pqk"}> : () -> ()
    %cst_12 = arith.constant dense<0.000000e+00> : vector<2x48x48xf32>
    %20 = tpu.matmul %15, %17, %cst_12 {dimension_numbers = #tpu.dot_dimension_numbers<[2], [2], [1], [1], [0, 0, 0, 1, 1, 1], [0], [0]>} : vector<2x48x32xbf16>, vector<2x48x32xbf16>, vector<2x48x48xf32> -> vector<2x48x48xf32>
    "tpu.trace_stop"() : () -> ()
    %cst_13 = arith.constant 0.176776692 : f32
    %21 = vector.broadcast %cst_13 : f32 to vector<2x48x48xf32>
    %22 = arith.mulf %20, %21 : vector<2x48x48xf32>
    %cst_14 = arith.constant 1.000000e+00 : f32
    %23 = vector.broadcast %cst_14 : f32 to vector<2x1x48xf32>
    %24 = arith.subf %23, %9 : vector<2x1x48xf32>
    %cst_15 = arith.constant -1.000000e+09 : f32
    %25 = vector.broadcast %cst_15 : f32 to vector<2x1x48xf32>
    %26 = arith.mulf %24, %25 : vector<2x1x48xf32>
    %27 = vector.broadcast %26 : vector<2x1x48xf32> to vector<2x48x48xf32>
    %28 = arith.addf %22, %27 : vector<2x48x48xf32>
    %cst_16 = arith.constant dense<0xFF800000> : vector<2x48xf32>
    %29 = vector.multi_reduction <maximumf>, %28, %cst_16 [2] : vector<2x48x48xf32> to vector<2x48xf32>
    %30 = vector.shape_cast %29 : vector<2x48xf32> to vector<2x48x1xf32>
    %31 = vector.broadcast %30 : vector<2x48x1xf32> to vector<2x48x48xf32>
    %32 = arith.subf %28, %31 : vector<2x48x48xf32>
    %33 = math.exp %32 : vector<2x48x48xf32>
    %cst_17 = arith.constant dense<0.000000e+00> : vector<2x48xf32>
    %34 = vector.multi_reduction <add>, %33, %cst_17 [2] : vector<2x48x48xf32> to vector<2x48xf32>
    %35 = vector.shape_cast %34 : vector<2x48xf32> to vector<2x48x1xf32>
    %36 = tpu.reciprocal %35 {approx = true} : vector<2x48x1xf32> -> vector<2x48x1xf32>
    %37 = vector.broadcast %36 : vector<2x48x1xf32> to vector<2x48x48xf32>
    %38 = arith.mulf %33, %37 : vector<2x48x48xf32>
    %39 = arith.truncf %38 : vector<2x48x48xf32> to vector<2x48x48xbf16>
    "tpu.trace_start"() <{level = 10 : i32, message = "pqk,pkd->pqd"}> : () -> ()
    %cst_18 = arith.constant dense<0.000000e+00> : vector<2x48x32xf32>
    %40 = tpu.matmul %39, %19, %cst_18 {dimension_numbers = #tpu.dot_dimension_numbers<[2], [1], [1], [2], [0, 0, 0, 1, 1, 2], [0], [0]>} : vector<2x48x48xbf16>, vector<2x48x32xbf16>, vector<2x48x32xf32> -> vector<2x48x32xf32>
    "tpu.trace_stop"() : () -> ()
    %41 = arith.extf %10 : vector<96x32xbf16> to vector<96x32xf32>
    %42 = vector.shape_cast %40 : vector<2x48x32xf32> to vector<96x32xf32>
    %43 = arith.truncf %42 : vector<96x32xf32> to vector<96x32xbf16>
    %c0_19 = arith.constant 0 : index
    %c0_20 = arith.constant 0 : index
    %44 = vector.load %arg6[%c0_19, %c0_20] : memref<32x32xbf16, #tpu.memory_space<vmem>>, vector<32x32xbf16>
    %cst_21 = arith.constant dense<0.000000e+00> : vector<96x32xf32>
    %45 = tpu.matmul %43, %44, %cst_21 {dimension_numbers = #tpu.dot_dimension_numbers<[1], [0], [0], [1], [0, 0, 1, 1], [], []>} : vector<96x32xbf16>, vector<32x32xbf16>, vector<96x32xf32> -> vector<96x32xf32>
    %46 = arith.addf %41, %45 : vector<96x32xf32>
    %47 = arith.truncf %46 : vector<96x32xf32> to vector<96x32xbf16>
    %c0_22 = arith.constant 0 : index
    %c0_23 = arith.constant 0 : index
    %48 = vector.load %arg7[%c0_22, %c0_23] : memref<32x64xbf16, #tpu.memory_space<vmem>>, vector<32x64xbf16>
    %cst_24 = arith.constant dense<0.000000e+00> : vector<96x64xf32>
    %49 = tpu.matmul %47, %48, %cst_24 {dimension_numbers = #tpu.dot_dimension_numbers<[1], [0], [0], [1], [0, 0, 1, 1], [], []>} : vector<96x32xbf16>, vector<32x64xbf16>, vector<96x64xf32> -> vector<96x64xf32>
    %cst_25 = arith.constant 0.000000e+00 : f32
    %50 = vector.broadcast %cst_25 : f32 to vector<96x64xf32>
    %51 = arith.maximumf %49, %50 : vector<96x64xf32>
    %52 = arith.truncf %51 : vector<96x64xf32> to vector<96x64xbf16>
    %c0_26 = arith.constant 0 : index
    %c0_27 = arith.constant 0 : index
    %53 = vector.load %arg8[%c0_26, %c0_27] : memref<64x32xbf16, #tpu.memory_space<vmem>>, vector<64x32xbf16>
    %cst_28 = arith.constant dense<0.000000e+00> : vector<96x32xf32>
    %54 = tpu.matmul %52, %53, %cst_28 {dimension_numbers = #tpu.dot_dimension_numbers<[1], [0], [0], [1], [0, 0, 1, 1], [], []>} : vector<96x64xbf16>, vector<64x32xbf16>, vector<96x32xf32> -> vector<96x32xf32>
    %55 = arith.addf %46, %54 : vector<96x32xf32>
    %56 = vector.shape_cast %55 : vector<96x32xf32> to vector<2x48x32xf32>
    %57 = arith.truncf %56 : vector<2x48x32xf32> to vector<2x48x32xbf16>
    %c0_29 = arith.constant 0 : index
    %c0_30 = arith.constant 0 : index
    %c0_31 = arith.constant 0 : index
    %c0_32 = arith.constant 0 : index
    %58 = vector.load %arg9[%c0_29, %c0_30, %c0_31, %c0_32] : memref<1x2x48x32xbf16, #tpu.memory_space<vmem>>, vector<1x2x48x32xbf16>
    %59 = vector.shape_cast %58 : vector<1x2x48x32xbf16> to vector<2x48x32xbf16>
    %60 = vector.shape_cast %57 : vector<2x48x32xbf16> to vector<1x2x48x32xbf16>
    tpu.vector_store %arg9[%c0_29, %c0_30, %c0_31, %c0_32], %60 {strides = array<i32>} : memref<1x2x48x32xbf16, #tpu.memory_space<vmem>>, vector<1x2x48x32xbf16>,
    return
  }
  func.func @transform_0(%arg0: i32, %arg1: i32) -> (i32, i32, i32, i32) {
    %c0_i32 = arith.constant 0 : i32
    %c0_i32_0 = arith.constant 0 : i32
    %c0_i32_1 = arith.constant 0 : i32
    return %arg0, %arg1, %c0_i32, %c0_i32_0 : i32, i32, i32, i32
  }
  func.func @transform_1(%arg0: i32, %arg1: i32) -> (i32, i32, i32) {
    %c0_i32 = arith.constant 0 : i32
    %c0_i32_0 = arith.constant 0 : i32
    %c0_i32_1 = arith.constant 0 : i32
    return %arg0, %c0_i32, %c0_i32_0 : i32, i32, i32
  }
  func.func @transform_2(%arg0: i32, %arg1: i32) -> (i32, i32, i32, i32) {
    %c0_i32 = arith.constant 0 : i32
    %c0_i32_0 = arith.constant 0 : i32
    %c0_i32_1 = arith.constant 0 : i32
    return %arg0, %arg1, %c0_i32, %c0_i32_0 : i32, i32, i32, i32
  }
  func.func @transform_3(%arg0: i32, %arg1: i32) -> (i32, i32) {
    %c0_i32 = arith.constant 0 : i32
    %c0_i32_0 = arith.constant 0 : i32
    %c0_i32_1 = arith.constant 0 : i32
    return %c0_i32, %c0_i32_0 : i32, i32
  }
  func.func @transform_4(%arg0: i32, %arg1: i32) -> (i32, i32) {
    %c0_i32 = arith.constant 0 : i32
    %c0_i32_0 = arith.constant 0 : i32
    %c0_i32_1 = arith.constant 0 : i32
    return %c0_i32, %c0_i32_0 : i32, i32
  }
  func.func @transform_5(%arg0: i32, %arg1: i32) -> (i32, i32) {
    %c0_i32 = arith.constant 0 : i32
    %c0_i32_0 = arith.constant 0 : i32
    %c0_i32_1 = arith.constant 0 : i32
    return %c0_i32, %c0_i32_0 : i32, i32
  }
  func.func @transform_6(%arg0: i32, %arg1: i32) -> (i32, i32) {
    %c0_i32 = arith.constant 0 : i32
    %c0_i32_0 = arith.constant 0 : i32
    %c0_i32_1 = arith.constant 0 : i32
    return %c0_i32, %c0_i32_0 : i32, i32
  }
  func.func @transform_7(%arg0: i32, %arg1: i32) -> (i32, i32, i32, i32) {
    %c0_i32 = arith.constant 0 : i32
    %c0_i32_0 = arith.constant 0 : i32
    %c0_i32_1 = arith.constant 0 : i32
    return %arg0, %arg1, %c0_i32, %c0_i32_0 : i32, i32, i32, i32
  }
}

module attributes {stable_mosaic.version = 11 : i64} {
  func.func @_vis_proj_kernel(%arg0: i32, %arg1: memref<1x40x20xbf16, #tpu.memory_space<vmem>>, %arg2: memref<20x32xbf16, #tpu.memory_space<vmem>>, %arg3: memref<1x40x32xbf16, #tpu.memory_space<vmem>>) attributes {dimension_semantics = [#tpu.dimension_semantics<parallel>], iteration_bounds = array<i64: 2>, scalar_prefetch = 0 : i64, scratch_operands = 0 : i64, tpu.core_type = #tpu.core_type<tc>, window_params = [{transform_indices = @transform_0, window_bounds = array<i64: 1, 40, 20>}, {pipeline_mode = #tpu.pipeline_mode<synchronous>, transform_indices = @transform_1, window_bounds = array<i64: 20, 32>}, {transform_indices = @transform_2, window_bounds = array<i64: 1, 40, 32>}]} {
    %c0 = arith.constant 0 : index
    %c0_0 = arith.constant 0 : index
    %c0_1 = arith.constant 0 : index
    %0 = vector.load %arg1[%c0, %c0_0, %c0_1] : memref<1x40x20xbf16, #tpu.memory_space<vmem>>, vector<1x40x20xbf16>
    %1 = vector.shape_cast %0 : vector<1x40x20xbf16> to vector<40x20xbf16>
    %c0_2 = arith.constant 0 : index
    %c0_3 = arith.constant 0 : index
    %2 = vector.load %arg2[%c0_2, %c0_3] : memref<20x32xbf16, #tpu.memory_space<vmem>>, vector<20x32xbf16>
    %cst = arith.constant dense<0.000000e+00> : vector<40x32xf32>
    %3 = tpu.matmul %1, %2, %cst {dimension_numbers = #tpu.dot_dimension_numbers<[1], [0], [0], [1], [0, 0, 1, 1], [], []>} : vector<40x20xbf16>, vector<20x32xbf16>, vector<40x32xf32> -> vector<40x32xf32>
    %4 = arith.truncf %3 : vector<40x32xf32> to vector<40x32xbf16>
    %c0_4 = arith.constant 0 : index
    %c0_5 = arith.constant 0 : index
    %c0_6 = arith.constant 0 : index
    %5 = vector.load %arg3[%c0_4, %c0_5, %c0_6] : memref<1x40x32xbf16, #tpu.memory_space<vmem>>, vector<1x40x32xbf16>
    %6 = vector.shape_cast %5 : vector<1x40x32xbf16> to vector<40x32xbf16>
    %7 = vector.shape_cast %4 : vector<40x32xbf16> to vector<1x40x32xbf16>
    tpu.vector_store %arg3[%c0_4, %c0_5, %c0_6], %7 {strides = array<i32>} : memref<1x40x32xbf16, #tpu.memory_space<vmem>>, vector<1x40x32xbf16>,
    return
  }
  func.func @transform_0(%arg0: i32) -> (i32, i32, i32) {
    %c0_i32 = arith.constant 0 : i32
    %c0_i32_0 = arith.constant 0 : i32
    %c0_i32_1 = arith.constant 0 : i32
    return %arg0, %c0_i32, %c0_i32_0 : i32, i32, i32
  }
  func.func @transform_1(%arg0: i32) -> (i32, i32) {
    %c0_i32 = arith.constant 0 : i32
    %c0_i32_0 = arith.constant 0 : i32
    %c0_i32_1 = arith.constant 0 : i32
    return %c0_i32, %c0_i32_0 : i32, i32
  }
  func.func @transform_2(%arg0: i32) -> (i32, i32, i32) {
    %c0_i32 = arith.constant 0 : i32
    %c0_i32_0 = arith.constant 0 : i32
    %c0_i32_1 = arith.constant 0 : i32
    return %arg0, %c0_i32, %c0_i32_0 : i32, i32, i32
  }
}

</mosaic_0001>

<llo_original>
// kernel: encoder_wrapper_forward.2
$region0: #{encoder_wrapper_forward.2}
  #allocation0 [shape = 'u32[]', space=smem, size = 0x4, offset = 0x4, fixed_abs, tag = 'smem constant byte address 0x4 - core index']
  #allocation1 [shape = 'u32[144,128]{1,0:T(1,128)}', space=vmem, size = 0x12000, scoped, tag = 'internal scratch']
  %s0 = inlined_call_operand.vmem [shape: bf16[2,40,20], index: 0, kind: input, shape index: {}]
  %s1 = inlined_call_operand.vmem [shape: bf16[20,32], index: 1, kind: input, shape index: {}]
  %s2 = inlined_call_operand.vmem [shape: bf16[2,40,32], index: 2, kind: output, shape index: {}]
  %s3 = sld [smem:[#allocation0]]
  $region41: #{encoder_wrapper_forward.2} parent=0
    _
  %s5 = ssub.s32 1, %s3
  %s6 = scalar_select 0, %s5, %s3
  loop: start=0, step=1, limit=4
  $region2: #{encoder_wrapper_forward.2} parent=0 // loop_pre_header
    _
  $region3: #{encoder_wrapper_forward.2} parent=0 // loop_header
    %s8 = sphi 0, %s12
    %p9 = scmp.ge.s32.totalorder %s8, 4
    %s18 = sphi 0, %s20
    %s21 = sphi 0, %s18
    %s22 = sphi 0, %s21
    %s38 = sphi 0, %s22
    %s42 = sphi 0, %s42
    %s44 = sphi 0, %s42
    %s45 = sphi 0, %s44
    %s59 = sphi 0, %s45
    %s65 = sphi 0, %s67
    %s68 = sphi 0, %s65
    %s69 = sphi 0, %s68
    %s85 = sphi 0, %s69
  $region4: #{encoder_wrapper_forward.2} parent=0 // loop_header_branch
    %11 = sbr.rel (%p9) target = $region8
  $region5: #{encoder_wrapper_forward.2} parent=0 // loop_body
    %s13 = ssub.s32 %s8, 1
    %s14 = ssub.s32 %s8, 2
    %s15 = sadd.s32 %s8, 1
    %s16 = ssub.s32 %s8, %s15
    %p17 = scmp.eq.s32.totalorder %s16, 0
    %s19 = sadd.s32 %s18, 1
    %s20 = scalar_select %p17, %s18, %s19
    %p23 = pneg %p17
    %p24 = scmp.eq.s32.totalorder %s8, 1
    %p25 = por %p23, %p24
    %p26 = scmp.ne.s32.totalorder %s18, %s21
    %p27 = scmp.eq.s32.totalorder %s8, 0
    %p28 = por %p26, %p27
    %p29 = scmp.ne.s32.totalorder %s18, %s21
    %p30 = scmp.eq.s32.totalorder %s13, 1
    %p31 = por %p29, %p30
    %p32 = scmp.ne.s32.totalorder %s21, %s22
    %p33 = scmp.eq.s32.totalorder %s13, 0
    %p34 = por %p32, %p33
    %p35 = scmp.ne.s32.totalorder %s21, %s22
    %p36 = scmp.eq.s32.totalorder %s14, 1
    %p37 = por %p35, %p36
    %p39 = scmp.ne.s32.totalorder %s22, %s38
    %p40 = scmp.eq.s32.totalorder %s14, 0
    %p41 = por %p39, %p40
    %s43 = sadd.s32 %s42, 1
    %p46 = scmp.eq.s32.totalorder %s8, 1
    %p47 = scmp.ne.s32.totalorder %s42, %s44
    %p48 = scmp.eq.s32.totalorder %s8, 0
    %p49 = por %p47, %p48
    %p50 = scmp.ne.s32.totalorder %s42, %s44
    %p51 = scmp.eq.s32.totalorder %s13, 1
    %p52 = por %p50, %p51
    %p53 = scmp.ne.s32.totalorder %s44, %s45
    %p54 = scmp.eq.s32.totalorder %s13, 0
    %p55 = por %p53, %p54
    %p56 = scmp.ne.s32.totalorder %s44, %s45
    %p57 = scmp.eq.s32.totalorder %s14, 1
    %p58 = por %p56, %p57
    %p60 = scmp.ne.s32.totalorder %s45, %s59
    %p61 = scmp.eq.s32.totalorder %s14, 0
    %p62 = por %p60, %p61
    %s63 = ssub.s32 %s8, %s15
    %p64 = scmp.eq.s32.totalorder %s63, 0
    %s66 = sadd.s32 %s65, 1
    %s67 = scalar_select %p64, %s65, %s66
    %p70 = pneg %p64
    %p71 = scmp.eq.s32.totalorder %s8, 1
    %p72 = por %p70, %p71
    %p73 = scmp.ne.s32.totalorder %s65, %s68
    %p74 = scmp.eq.s32.totalorder %s8, 0
    %p75 = por %p73, %p74
    %p76 = scmp.ne.s32.totalorder %s65, %s68
    %p77 = scmp.eq.s32.totalorder %s13, 1
    %p78 = por %p76, %p77
    %p79 = scmp.ne.s32.totalorder %s68, %s69
    %p80 = scmp.eq.s32.totalorder %s13, 0
    %p81 = por %p79, %p80
    %p82 = scmp.ne.s32.totalorder %s68, %s69
    %p83 = scmp.eq.s32.totalorder %s14, 1
    %p84 = por %p82, %p83
    %p86 = scmp.ne.s32.totalorder %s69, %s85
    %p87 = scmp.eq.s32.totalorder %s14, 0
    %p88 = por %p86, %p87
    %p89 = scmp.le.s32.totalorder 1, %s8
    %p90 = scmp.lt.s32.totalorder %s8, 3
    %p91 = pnand %p89, %p90
    %p92 = pneg %p91
    // Predicated region
    $region9: #{encoder_wrapper_forward.2} parent=5 // pred_check
      _
    $region10: #{encoder_wrapper_forward.2} parent=5 // pred_check_branch
      %94 = sbr.rel (%p91) target = $region12
    $region11: #{encoder_wrapper_forward.2} parent=5 // pred_region
      %s95 = ssub.s32 %s8, 1
      // Predicated region
      $region13: #{encoder_wrapper_forward.2} parent=11 // pred_check
        %p96 = pneg %p55
      $region14: #{encoder_wrapper_forward.2} parent=11 // pred_check_branch
        %98 = sbr.rel (%p96) target = $region16
      $region15: #{encoder_wrapper_forward.2} parent=11 // pred_region
        _
      $region16: #{encoder_wrapper_forward.2} parent=11 // pred_fallthru
        _
    $region12: #{encoder_wrapper_forward.2} parent=5 // pred_fallthru
      _
    %p99 = scmp.lt.s32.totalorder %s8, 2
    // Predicated region
    $region17: #{encoder_wrapper_forward.2} parent=5 // pred_check
      %p100 = pneg %p99
    $region18: #{encoder_wrapper_forward.2} parent=5 // pred_check_branch
      %102 = sbr.rel (%p100) target = $region20
    $region19: #{encoder_wrapper_forward.2} parent=5 // pred_region
      // Predicated region
      $region21: #{encoder_wrapper_forward.2} parent=19 // pred_check
        %p103 = pneg %p28
      $region22: #{encoder_wrapper_forward.2} parent=19 // pred_check_branch
        %105 = sbr.rel (%p103) target = $region24
      $region23: #{encoder_wrapper_forward.2} parent=19 // pred_region
        %p106 = scmp.lt.s32.totalorder %s8, 1
        %s107 = scalar_select %p106, %s8, 1
        %s108 = smul.addr %s107, 5
        %s109 = smul.addr %s108, 4
        %s110 = scalar_lea.vmem %s0, %s109
      $region24: #{encoder_wrapper_forward.2} parent=19 // pred_fallthru
        _
    $region20: #{encoder_wrapper_forward.2} parent=5 // pred_fallthru
      _
    %p111 = scmp.le.s32.totalorder 1, %s8
    %p112 = scmp.lt.s32.totalorder %s8, 3
    %p113 = pnand %p111, %p112
    %p114 = pneg %p113
    // Predicated region
    $region25: #{encoder_wrapper_forward.2} parent=5 // pred_check
      _
    $region26: #{encoder_wrapper_forward.2} parent=5 // pred_check_branch
      %116 = sbr.rel (%p113) target = $region28
    $region27: #{encoder_wrapper_forward.2} parent=5 // pred_region
      %s117 = ssub.s32 %s8, 1
      %p118 = scmp.lt.s32.totalorder %s13, 1
      %s119 = scalar_select %p118, %s13, 1
      %s120 = smul.addr %s119, 5
      %s121 = smul.addr %s120, 4
      %s122 = scalar_lea.vmem %s0, %s121
      %p123 = pneg %p34
      %p124 = pneg %p31
      %p125 = pneg %p55
      %p126 = pneg %p52
      %p127 = pneg %p81
      %p128 = pneg %p78
      %p129 = scmp.lt.s32.totalorder %s13, 1
      %s130 = scalar_select %p129, %s13, 1
      %s131 = smul.addr %s130, 5
      %s132 = smul.addr %s131, 4
      %s133 = scalar_lea.vmem %s2, %s132
      %p134 = scmp.lt.s32.totalorder %s13, 1
      %s135 = scalar_select %p134, %s13, 1
      %s136 = smul.addr %s135, 5
      %s137 = smul.addr %s136, 4
      %s138 = scalar_lea.vmem %s0, %s137
      %p139 = scmp.lt.s32.totalorder %s13, 1
      %s140 = scalar_select %p139, %s13, 1
      %s141 = smul.addr %s140, 5
      %s142 = smul.addr %s141, 4
      %s143 = scalar_lea.vmem %s2, %s142
      %v145 = vld [vmem:[%s138] sm:$0xf]
      %v146 = vld [vmem:[%s138 + $0x4] sm:$0xf]
      %v147 = vld [vmem:[%s138 + $0x8] sm:$0xf]
      %v148 = vld [vmem:[%s138 + $0xc] sm:$0xf]
      %v149 = vld [vmem:[%s138 + $0x10] sm:$0xf]
      %v150 = vld [vmem:[%s1] sm:$0xf]
      %v151 = vld [vmem:[%s1 + $0x4] sm:$0xf]
      %v152 = vld [vmem:[%s1 + $0x8] sm:$0x3]
      %v158 = vunpack.c.l.b16 %v145
      %v159 = vunpack.c.l.b16 %v146
      %v160 = vunpack.c.l.b16 %v147
      %v161 = vunpack.c.l.b16 %v148
      %v162 = vunpack.c.l.b16 %v149
      %v163 = vpack.c.b16 %v159, %v158
      %v164 = vpack.c.b16 %v161, %v160
      %v165 = vpack.c.b16 %v162, %v162
      %v169 = vunpack.c.l.b16 %v150
      %v170 = vunpack.c.l.b16 %v151
      %v171 = vunpack.c.l.b16 %v152
      %v172 = vpack.c.b16 %v170, %v169
      %v173 = vpack.c.b16 %v171, %v171
      %vm175 = vcmask 162816
      %v177 = vsel %vm175, %v163, 0
      %v180 = vsel %vm175, %v164, 0
      %v183 = vsel %vm175, %v165, 0
      %vm185 = vcmask 1041408
      %v187 = vsel %vm185, %v173, 0
      %189 = vmatprep.subr.bf16.mxu0 0
      %190 = vmatpush1.bf16.msra.mxu0 0
      %191 = vmatprep.subr.bf16.mxu0 0
      %192 = vmatpush1.bf16.msra.mxu0 0
      %193 = vmatprep.subr.bf16.mxu0 0
      %194 = vmatpush1.bf16.msra.mxu0 0
      %195 = vmatprep.subr.bf16.mxu0 0
      %196 = vmatpush1.bf16.msra.mxu0 0
      %197 = vmatprep.subr.bf16.mxu0 0
      %198 = vmatpush1.bf16.msra.mxu0 0
      %199 = vmatprep.subr.bf16.mxu0 0
      %200 = vmatpush1.bf16.msra.mxu0 0
      %201 = vmatprep.subr.bf16.mxu0 0
      %202 = vmatpush1.bf16.msra.mxu0 %v187
      %203 = vmatprep.subr.bf16.mxu0 0
      %204 = vmatpush1.bf16.msra.mxu0 %v172
      %205 = vmatprep.subr.bf16.mxu0 0
      %206 = vmatpush2.bf16.msra.mxu0 0
      %207 = vmatprep.subr.bf16.mxu0 0
      %208 = vmatpush2.bf16.msra.mxu0 0
      %209 = vmatprep.subr.bf16.mxu0 0
      %210 = vmatpush2.bf16.msra.mxu0 0
      %211 = vmatprep.subr.bf16.mxu0 0
      %212 = vmatpush2.bf16.msra.mxu0 0
      %213 = vmatprep.subr.bf16.mxu0 0
      %214 = vmatpush2.bf16.msra.mxu0 0
      %215 = vmatprep.subr.bf16.mxu0 0
      %216 = vmatpush2.bf16.msra.mxu0 0
      %217 = vmatprep.subr.bf16.mxu0 0
      %218 = vmatpush2.bf16.msra.mxu0 0
      %219 = vmatprep.subr.bf16.mxu0 0
      %220 = vmatpush2.bf16.msra.mxu0 0
      %221 = vmatprep.mubr.bf16.mxu0 0
      %222 = vmatmul.mubr.bf16.gmra.mxu0 %v177
      %v223 = vpop.f32.mrf.mxu0
      %v224 = vadd.f32 0.0, %v223
      %v225 = vpop.f32.mrf.mxu0
      %v226 = vpop.f32.mrf.mxu0
      %v227 = vadd.f32 0.0, %v226
      %v228 = vpop.f32.mrf.mxu0
      %229 = vmatprep.mubr.bf16.mxu0 0
      %230 = vmatmul.mubr.bf16.gmra.mxu0 %v180
      %v231 = vpop.f32.mrf.mxu0
      %v232 = vadd.f32 0.0, %v231
      %v233 = vpop.f32.mrf.mxu0
      %v234 = vpop.f32.mrf.mxu0
      %v235 = vadd.f32 0.0, %v234
      %v236 = vpop.f32.mrf.mxu0
      %237 = vmatprep.mubr.bf16.mxu0 0
      %238 = vmatmul.mubr.bf16.gmra.mxu0 %v183
      %v239 = vpop.f32.mrf.mxu0
      %v240 = vadd.f32 0.0, %v239
      %v241 = vpop.f32.mrf.mxu0
      %v242 = vpop.f32.mrf.mxu0
      %v243 = vpop.f32.mrf.mxu0
      %244 = vdwg.mxu0
      %v245 = vpack.c.bf16 %v227, %v224
      %v246 = vpack.c.bf16 %v235, %v232
      %v247 = vpack.c.bf16 %v240, %v240
      %v251 = vunpack.c.l.b16 %v245
      %v252 = vunpack.c.h.b16 %v245
      %v253 = vunpack.c.l.b16 %v246
      %v254 = vunpack.c.h.b16 %v246
      %v255 = vunpack.c.l.b16 %v247
      %v256 = vpack.c.b16 %v251, %v251
      %v257 = vpack.c.b16 %v252, %v252
      %v258 = vpack.c.b16 %v253, %v253
      %v259 = vpack.c.b16 %v254, %v254
      %v260 = vpack.c.b16 %v255, %v255
      %vm266 = vcmask 257024
      %267 = vst.msk [vmem:[%s143] sm:$0xf] %vm266, %v256
      %268 = vst.msk [vmem:[%s143 + $0x4] sm:$0xf] %vm266, %v257
      %269 = vst.msk [vmem:[%s143 + $0x8] sm:$0xf] %vm266, %v258
      %270 = vst.msk [vmem:[%s143 + $0xc] sm:$0xf] %vm266, %v259
      %271 = vst.msk [vmem:[%s143 + $0x10] sm:$0xf] %vm266, %v260
      %p272 = scmp.lt.s32.totalorder %s13, 1
      %s273 = scalar_select %p272, %s13, 1
      %s274 = smul.addr %s273, 5
      %s275 = smul.addr %s274, 4
      %s276 = scalar_lea.vmem %s2, %s275
      // Predicated region
      $region29: #{encoder_wrapper_forward.2} parent=27 // pred_check
        %p277 = pneg %p78
      $region30: #{encoder_wrapper_forward.2} parent=27 // pred_check_branch
        %279 = sbr.rel (%p277) target = $region32
      $region31: #{encoder_wrapper_forward.2} parent=27 // pred_region
        _
      $region32: #{encoder_wrapper_forward.2} parent=27 // pred_fallthru
        _
    $region28: #{encoder_wrapper_forward.2} parent=5 // pred_fallthru
      _
    %p280 = scmp.le.s32.totalorder 2, %s8
    // Predicated region
    $region33: #{encoder_wrapper_forward.2} parent=5 // pred_check
      %p281 = pneg %p280
    $region34: #{encoder_wrapper_forward.2} parent=5 // pred_check_branch
      %283 = sbr.rel (%p281) target = $region36
    $region35: #{encoder_wrapper_forward.2} parent=5 // pred_region
      %s284 = ssub.s32 %s8, 2
      // Predicated region
      $region37: #{encoder_wrapper_forward.2} parent=35 // pred_check
        %p285 = pneg %p84
      $region38: #{encoder_wrapper_forward.2} parent=35 // pred_check_branch
        %287 = sbr.rel (%p285) target = $region40
      $region39: #{encoder_wrapper_forward.2} parent=35 // pred_region
        %p288 = scmp.lt.s32.totalorder %s14, 1
        %s289 = scalar_select %p288, %s14, 1
        %s290 = smul.addr %s289, 5
        %s291 = smul.addr %s290, 4
        %s292 = scalar_lea.vmem %s2, %s291
      $region40: #{encoder_wrapper_forward.2} parent=35 // pred_fallthru
        _
    $region36: #{encoder_wrapper_forward.2} parent=5 // pred_fallthru
      _
  $region6: #{encoder_wrapper_forward.2} parent=0 // loop_footer
    %s12 = sadd.s32 1, %s8
  $region7: #{encoder_wrapper_forward.2} parent=0 // loop_footer_branch
    %7 = sbr.rel target = $region3
  $region8: #{encoder_wrapper_forward.2} parent=0 // loop_exit
    _

// kernel: encoder_wrapper_forward.3
$region0: #{encoder_wrapper_forward.3}
  #allocation0 [shape = 'u32[]', space=smem, size = 0x4, offset = 0x4, fixed_abs, tag = 'smem constant byte address 0x4 - core index']
  #allocation1 [shape = 'u32[144,128]{1,0:T(1,128)}', space=vmem, size = 0x12000, scoped, tag = 'internal scratch']
  %s0 = inlined_call_operand.vmem [shape: bf16[2,2,8,32], index: 0, kind: input, shape index: {}]
  %s1 = inlined_call_operand.vmem [shape: bf16[2,40,32], index: 1, kind: input, shape index: {}]
  %s2 = inlined_call_operand.vmem [shape: f32[2,2,1,48], index: 2, kind: input, shape index: {}]
  %s3 = inlined_call_operand.vmem [shape: bf16[32,96], index: 3, kind: input, shape index: {}]
  %s4 = inlined_call_operand.vmem [shape: bf16[32,32], index: 4, kind: input, shape index: {}]
  %s5 = inlined_call_operand.vmem [shape: bf16[32,64], index: 5, kind: input, shape index: {}]
  %s6 = inlined_call_operand.vmem [shape: bf16[64,32], index: 6, kind: input, shape index: {}]
  %s7 = inlined_call_operand.vmem [shape: bf16[2,2,48,32], index: 7, kind: output, shape index: {}]
  %s8 = sld [smem:[#allocation0]]
  $region61: #{encoder_wrapper_forward.3} parent=0
    _
  %s10 = ssub.s32 1, %s8
  %s11 = scalar_select 0, %s10, %s8
  loop: start=0, step=1, limit=4
  $region2: #{encoder_wrapper_forward.3} parent=0 // loop_pre_header
    _
  $region3: #{encoder_wrapper_forward.3} parent=0 // loop_header
    %s13 = sphi 0, %s17
    %p14 = scmp.ge.s32.totalorder %s13, 4
    %s20 = sphi 0, %s32
    %s21 = sphi 0, %s28
    %s22 = sphi 0, %s20
    %s23 = sphi 0, %s21
    %s24 = sphi 0, %s22
    %s25 = sphi 0, %s23
    %s37 = sphi 0, %s39
    %s40 = sphi 0, %s37
    %s41 = sphi 0, %s40
    %s57 = sphi 0, %s41
    %s63 = sphi 0, %s65
    %s66 = sphi 0, %s63
    %s67 = sphi 0, %s66
    %s83 = sphi 0, %s67
    %s91 = sphi 0, %s93
    %s94 = sphi 0, %s91
    %s95 = sphi 0, %s94
    %s111 = sphi 0, %s95
    %s115 = sphi 0, %s115
    %s117 = sphi 0, %s115
    %s118 = sphi 0, %s117
    %s132 = sphi 0, %s118
    %s136 = sphi 0, %s136
    %s138 = sphi 0, %s136
    %s139 = sphi 0, %s138
    %s153 = sphi 0, %s139
    %s157 = sphi 0, %s157
    %s159 = sphi 0, %s157
    %s160 = sphi 0, %s159
    %s174 = sphi 0, %s160
    %s178 = sphi 0, %s178
    %s180 = sphi 0, %s178
    %s181 = sphi 0, %s180
    %s195 = sphi 0, %s181
    %s203 = sphi 0, %s205
    %s206 = sphi 0, %s203
    %s207 = sphi 0, %s206
    %s223 = sphi 0, %s207
  $region4: #{encoder_wrapper_forward.3} parent=0 // loop_header_branch
    %16 = sbr.rel (%p14) target = $region8
  $region5: #{encoder_wrapper_forward.3} parent=0 // loop_body
    %s18 = ssub.s32 %s13, 1
    %s19 = ssub.s32 %s13, 2
    %s26 = sadd.s32 1, %s21
    %p27 = scmp.ge.s32.totalorder %s26, 1
    %s28 = scalar_select %p27, 0, %s26
    %s29 = sadd.s32 1, %s20
    %s30 = scalar_select %p27, %s29, %s20
    %p31 = scmp.ge.s32.totalorder %s30, 2
    %s32 = scalar_select %p31, 0, %s30
    %s33 = ssub.s32 %s20, %s32
    %s34 = ssub.s32 %s21, %s28
    %s35 = sor.u32 %s33, %s34
    %p36 = scmp.eq.s32.totalorder %s35, 0
    %s38 = sadd.s32 %s37, 1
    %s39 = scalar_select %p36, %s37, %s38
    %p42 = pneg %p36
    %p43 = scmp.eq.s32.totalorder %s13, 1
    %p44 = por %p42, %p43
    %p45 = scmp.ne.s32.totalorder %s37, %s40
    %p46 = scmp.eq.s32.totalorder %s13, 0
    %p47 = por %p45, %p46
    %p48 = scmp.ne.s32.totalorder %s37, %s40
    %p49 = scmp.eq.s32.totalorder %s18, 1
    %p50 = por %p48, %p49
    %p51 = scmp.ne.s32.totalorder %s40, %s41
    %p52 = scmp.eq.s32.totalorder %s18, 0
    %p53 = por %p51, %p52
    %p54 = scmp.ne.s32.totalorder %s40, %s41
    %p55 = scmp.eq.s32.totalorder %s19, 1
    %p56 = por %p54, %p55
    %p58 = scmp.ne.s32.totalorder %s41, %s57
    %p59 = scmp.eq.s32.totalorder %s19, 0
    %p60 = por %p58, %p59
    %s61 = ssub.s32 %s20, %s32
    %p62 = scmp.eq.s32.totalorder %s61, 0
    %s64 = sadd.s32 %s63, 1
    %s65 = scalar_select %p62, %s63, %s64
    %p68 = pneg %p62
    %p69 = scmp.eq.s32.totalorder %s13, 1
    %p70 = por %p68, %p69
    %p71 = scmp.ne.s32.totalorder %s63, %s66
    %p72 = scmp.eq.s32.totalorder %s13, 0
    %p73 = por %p71, %p72
    %p74 = scmp.ne.s32.totalorder %s63, %s66
    %p75 = scmp.eq.s32.totalorder %s18, 1
    %p76 = por %p74, %p75
    %p77 = scmp.ne.s32.totalorder %s66, %s67
    %p78 = scmp.eq.s32.totalorder %s18, 0
    %p79 = por %p77, %p78
    %p80 = scmp.ne.s32.totalorder %s66, %s67
    %p81 = scmp.eq.s32.totalorder %s19, 1
    %p82 = por %p80, %p81
    %p84 = scmp.ne.s32.totalorder %s67, %s83
    %p85 = scmp.eq.s32.totalorder %s19, 0
    %p86 = por %p84, %p85
    %s87 = ssub.s32 %s20, %s32
    %s88 = ssub.s32 %s21, %s28
    %s89 = sor.u32 %s87, %s88
    %p90 = scmp.eq.s32.totalorder %s89, 0
    %s92 = sadd.s32 %s91, 1
    %s93 = scalar_select %p90, %s91, %s92
    %p96 = pneg %p90
    %p97 = scmp.eq.s32.totalorder %s13, 1
    %p98 = por %p96, %p97
    %p99 = scmp.ne.s32.totalorder %s91, %s94
    %p100 = scmp.eq.s32.totalorder %s13, 0
    %p101 = por %p99, %p100
    %p102 = scmp.ne.s32.totalorder %s91, %s94
    %p103 = scmp.eq.s32.totalorder %s18, 1
    %p104 = por %p102, %p103
    %p105 = scmp.ne.s32.totalorder %s94, %s95
    %p106 = scmp.eq.s32.totalorder %s18, 0
    %p107 = por %p105, %p106
    %p108 = scmp.ne.s32.totalorder %s94, %s95
    %p109 = scmp.eq.s32.totalorder %s19, 1
    %p110 = por %p108, %p109
    %p112 = scmp.ne.s32.totalorder %s95, %s111
    %p113 = scmp.eq.s32.totalorder %s19, 0
    %p114 = por %p112, %p113
    %s116 = sadd.s32 %s115, 1
    %p119 = scmp.eq.s32.totalorder %s13, 1
    %p120 = scmp.ne.s32.totalorder %s115, %s117
    %p121 = scmp.eq.s32.totalorder %s13, 0
    %p122 = por %p120, %p121
    %p123 = scmp.ne.s32.totalorder %s115, %s117
    %p124 = scmp.eq.s32.totalorder %s18, 1
    %p125 = por %p123, %p124
    %p126 = scmp.ne.s32.totalorder %s117, %s118
    %p127 = scmp.eq.s32.totalorder %s18, 0
    %p128 = por %p126, %p127
    %p129 = scmp.ne.s32.totalorder %s117, %s118
    %p130 = scmp.eq.s32.totalorder %s19, 1
    %p131 = por %p129, %p130
    %p133 = scmp.ne.s32.totalorder %s118, %s132
    %p134 = scmp.eq.s32.totalorder %s19, 0
    %p135 = por %p133, %p134
    %s137 = sadd.s32 %s136, 1
    %p140 = scmp.eq.s32.totalorder %s13, 1
    %p141 = scmp.ne.s32.totalorder %s136, %s138
    %p142 = scmp.eq.s32.totalorder %s13, 0
    %p143 = por %p141, %p142
    %p144 = scmp.ne.s32.totalorder %s136, %s138
    %p145 = scmp.eq.s32.totalorder %s18, 1
    %p146 = por %p144, %p145
    %p147 = scmp.ne.s32.totalorder %s138, %s139
    %p148 = scmp.eq.s32.totalorder %s18, 0
    %p149 = por %p147, %p148
    %p150 = scmp.ne.s32.totalorder %s138, %s139
    %p151 = scmp.eq.s32.totalorder %s19, 1
    %p152 = por %p150, %p151
    %p154 = scmp.ne.s32.totalorder %s139, %s153
    %p155 = scmp.eq.s32.totalorder %s19, 0
    %p156 = por %p154, %p155
    %s158 = sadd.s32 %s157, 1
    %p161 = scmp.eq.s32.totalorder %s13, 1
    %p162 = scmp.ne.s32.totalorder %s157, %s159
    %p163 = scmp.eq.s32.totalorder %s13, 0
    %p164 = por %p162, %p163
    %p165 = scmp.ne.s32.totalorder %s157, %s159
    %p166 = scmp.eq.s32.totalorder %s18, 1
    %p167 = por %p165, %p166
    %p168 = scmp.ne.s32.totalorder %s159, %s160
    %p169 = scmp.eq.s32.totalorder %s18, 0
    %p170 = por %p168, %p169
    %p171 = scmp.ne.s32.totalorder %s159, %s160
    %p172 = scmp.eq.s32.totalorder %s19, 1
    %p173 = por %p171, %p172
    %p175 = scmp.ne.s32.totalorder %s160, %s174
    %p176 = scmp.eq.s32.totalorder %s19, 0
    %p177 = por %p175, %p176
    %s179 = sadd.s32 %s178, 1
    %p182 = scmp.eq.s32.totalorder %s13, 1
    %p183 = scmp.ne.s32.totalorder %s178, %s180
    %p184 = scmp.eq.s32.totalorder %s13, 0
    %p185 = por %p183, %p184
    %p186 = scmp.ne.s32.totalorder %s178, %s180
    %p187 = scmp.eq.s32.totalorder %s18, 1
    %p188 = por %p186, %p187
    %p189 = scmp.ne.s32.totalorder %s180, %s181
    %p190 = scmp.eq.s32.totalorder %s18, 0
    %p191 = por %p189, %p190
    %p192 = scmp.ne.s32.totalorder %s180, %s181
    %p193 = scmp.eq.s32.totalorder %s19, 1
    %p194 = por %p192, %p193
    %p196 = scmp.ne.s32.totalorder %s181, %s195
    %p197 = scmp.eq.s32.totalorder %s19, 0
    %p198 = por %p196, %p197
    %s199 = ssub.s32 %s20, %s32
    %s200 = ssub.s32 %s21, %s28
    %s201 = sor.u32 %s199, %s200
    %p202 = scmp.eq.s32.totalorder %s201, 0
    %s204 = sadd.s32 %s203, 1
    %s205 = scalar_select %p202, %s203, %s204
    %p208 = pneg %p202
    %p209 = scmp.eq.s32.totalorder %s13, 1
    %p210 = por %p208, %p209
    %p211 = scmp.ne.s32.totalorder %s203, %s206
    %p212 = scmp.eq.s32.totalorder %s13, 0
    %p213 = por %p211, %p212
    %p214 = scmp.ne.s32.totalorder %s203, %s206
    %p215 = scmp.eq.s32.totalorder %s18, 1
    %p216 = por %p214, %p215
    %p217 = scmp.ne.s32.totalorder %s206, %s207
    %p218 = scmp.eq.s32.totalorder %s18, 0
    %p219 = por %p217, %p218
    %p220 = scmp.ne.s32.totalorder %s206, %s207
    %p221 = scmp.eq.s32.totalorder %s19, 1
    %p222 = por %p220, %p221
    %p224 = scmp.ne.s32.totalorder %s207, %s223
    %p225 = scmp.eq.s32.totalorder %s19, 0
    %p226 = por %p224, %p225
    %p227 = scmp.le.s32.totalorder 1, %s13
    %p228 = scmp.lt.s32.totalorder %s13, 3
    %p229 = pnand %p227, %p228
    %p230 = pneg %p229
    // Predicated region
    $region9: #{encoder_wrapper_forward.3} parent=5 // pred_check
      _
    $region10: #{encoder_wrapper_forward.3} parent=5 // pred_check_branch
      %232 = sbr.rel (%p229) target = $region12
    $region11: #{encoder_wrapper_forward.3} parent=5 // pred_region
      %s233 = ssub.s32 %s13, 1
      // Predicated region
      $region13: #{encoder_wrapper_forward.3} parent=11 // pred_check
        %p234 = pneg %p128
      $region14: #{encoder_wrapper_forward.3} parent=11 // pred_check_branch
        %236 = sbr.rel (%p234) target = $region16
      $region15: #{encoder_wrapper_forward.3} parent=11 // pred_region
        _
      $region16: #{encoder_wrapper_forward.3} parent=11 // pred_fallthru
        _
      // Predicated region
      $region17: #{encoder_wrapper_forward.3} parent=11 // pred_check
        %p237 = pneg %p149
      $region18: #{encoder_wrapper_forward.3} parent=11 // pred_check_branch
        %239 = sbr.rel (%p237) target = $region20
      $region19: #{encoder_wrapper_forward.3} parent=11 // pred_region
        _
      $region20: #{encoder_wrapper_forward.3} parent=11 // pred_fallthru
        _
      // Predicated region
      $region21: #{encoder_wrapper_forward.3} parent=11 // pred_check
        %p240 = pneg %p170
      $region22: #{encoder_wrapper_forward.3} parent=11 // pred_check_branch
        %242 = sbr.rel (%p240) target = $region24
      $region23: #{encoder_wrapper_forward.3} parent=11 // pred_region
        _
      $region24: #{encoder_wrapper_forward.3} parent=11 // pred_fallthru
        _
      // Predicated region
      $region25: #{encoder_wrapper_forward.3} parent=11 // pred_check
        %p243 = pneg %p191
      $region26: #{encoder_wrapper_forward.3} parent=11 // pred_check_branch
        %245 = sbr.rel (%p243) target = $region28
      $region27: #{encoder_wrapper_forward.3} parent=11 // pred_region
        _
      $region28: #{encoder_wrapper_forward.3} parent=11 // pred_fallthru
        _
    $region12: #{encoder_wrapper_forward.3} parent=5 // pred_fallthru
      _
    %p246 = scmp.lt.s32.totalorder %s13, 2
    // Predicated region
    $region29: #{encoder_wrapper_forward.3} parent=5 // pred_check
      %p247 = pneg %p246
    $region30: #{encoder_wrapper_forward.3} parent=5 // pred_check_branch
      %249 = sbr.rel (%p247) target = $region32
    $region31: #{encoder_wrapper_forward.3} parent=5 // pred_region
      // Predicated region
      $region33: #{encoder_wrapper_forward.3} parent=31 // pred_check
        %p250 = pneg %p47
      $region34: #{encoder_wrapper_forward.3} parent=31 // pred_check_branch
        %252 = sbr.rel (%p250) target = $region36
      $region35: #{encoder_wrapper_forward.3} parent=31 // pred_region
        %s253 = smul.u32 2, %s21
        %p254 = scmp.lt.s32.totalorder %s20, 1
        %s255 = scalar_select %p254, %s20, 1
        %p256 = scmp.lt.s32.totalorder %s253, 1
        %s257 = scalar_select %p256, %s253, 1
        %s258 = smul.addr %s255, 2
        %s259 = sadd.s32 %s257, %s258
        %s260 = smul.addr %s259, 4
        %s261 = scalar_lea.vmem %s0, %s260
        %s262 = smul.u32 2, %s21
      $region36: #{encoder_wrapper_forward.3} parent=31 // pred_fallthru
        _
      // Predicated region
      $region37: #{encoder_wrapper_forward.3} parent=31 // pred_check
        %p263 = pneg %p73
      $region38: #{encoder_wrapper_forward.3} parent=31 // pred_check_branch
        %265 = sbr.rel (%p263) target = $region40
      $region39: #{encoder_wrapper_forward.3} parent=31 // pred_region
        %p266 = scmp.lt.s32.totalorder %s20, 1
        %s267 = scalar_select %p266, %s20, 1
        %s268 = smul.addr %s267, 5
        %s269 = smul.addr %s268, 4
        %s270 = scalar_lea.vmem %s1, %s269
      $region40: #{encoder_wrapper_forward.3} parent=31 // pred_fallthru
        _
      // Predicated region
      $region41: #{encoder_wrapper_forward.3} parent=31 // pred_check
        %p271 = pneg %p101
      $region42: #{encoder_wrapper_forward.3} parent=31 // pred_check_branch
        %273 = sbr.rel (%p271) target = $region44
      $region43: #{encoder_wrapper_forward.3} parent=31 // pred_region
        %s274 = smul.u32 2, %s21
        %p275 = scmp.lt.s32.totalorder %s20, 1
        %s276 = scalar_select %p275, %s20, 1
        %p277 = scmp.lt.s32.totalorder %s274, 1
        %s278 = scalar_select %p277, %s274, 1
        %s279 = smul.addr %s276, 2
        %s280 = sadd.s32 %s278, %s279
        %s281 = scalar_lea.vmem %s2, %s280
        %s282 = smul.u32 2, %s21
      $region44: #{encoder_wrapper_forward.3} parent=31 // pred_fallthru
        _
    $region32: #{encoder_wrapper_forward.3} parent=5 // pred_fallthru
      _
    %p283 = scmp.le.s32.totalorder 1, %s13
    %p284 = scmp.lt.s32.totalorder %s13, 3
    %p285 = pnand %p283, %p284
    %p286 = pneg %p285
    // Predicated region
    $region45: #{encoder_wrapper_forward.3} parent=5 // pred_check
      _
    $region46: #{encoder_wrapper_forward.3} parent=5 // pred_check_branch
      %288 = sbr.rel (%p285) target = $region48
    $region47: #{encoder_wrapper_forward.3} parent=5 // pred_region
      %s289 = ssub.s32 %s13, 1
      %s290 = smul.u32 2, %s23
      %p291 = scmp.lt.s32.totalorder %s22, 1
      %s292 = scalar_select %p291, %s22, 1
      %p293 = scmp.lt.s32.totalorder %s290, 1
      %s294 = scalar_select %p293, %s290, 1
      %s295 = smul.addr %s292, 2
      %s296 = sadd.s32 %s294, %s295
      %s297 = smul.addr %s296, 4
      %s298 = scalar_lea.vmem %s0, %s297
      %p299 = pneg %p53
      %p300 = pneg %p50
      %p301 = scmp.lt.s32.totalorder %s22, 1
      %s302 = scalar_select %p301, %s22, 1
      %s303 = smul.addr %s302, 5
      %s304 = smul.addr %s303, 4
      %s305 = scalar_lea.vmem %s1, %s304
      %p306 = pneg %p79
      %p307 = pneg %p76
      %s308 = smul.u32 2, %s23
      %p309 = scmp.lt.s32.totalorder %s22, 1
      %s310 = scalar_select %p309, %s22, 1
      %p311 = scmp.lt.s32.totalorder %s308, 1
      %s312 = scalar_select %p311, %s308, 1
      %s313 = smul.addr %s310, 2
      %s314 = sadd.s32 %s312, %s313
      %s315 = scalar_lea.vmem %s2, %s314
      %p316 = pneg %p107
      %p317 = pneg %p104
      %p318 = pneg %p128
      %p319 = pneg %p125
      %p320 = pneg %p149
      %p321 = pneg %p146
      %p322 = pneg %p170
      %p323 = pneg %p167
      %p324 = pneg %p191
      %p325 = pneg %p188
      %p326 = pneg %p219
      %p327 = pneg %p216
      %s328 = smul.u32 2, %s23
      %p329 = scmp.lt.s32.totalorder %s22, 1
      %s330 = scalar_select %p329, %s22, 1
      %p331 = scmp.lt.s32.totalorder %s328, 1
      %s332 = scalar_select %p331, %s328, 1
      %s333 = smul.addr %s332, 6
      %s334 = smul.addr %s330, 12
      %s335 = sadd.s32 %s333, %s334
      %s336 = smul.addr %s335, 4
      %s337 = scalar_lea.vmem %s7, %s336
      %s338 = smul.u32 2, %s23
      %p339 = scmp.lt.s32.totalorder %s22, 1
      %s340 = scalar_select %p339, %s22, 1
      %p341 = scmp.lt.s32.totalorder %s338, 1
      %s342 = scalar_select %p341, %s338, 1
      %s343 = smul.addr %s340, 2
      %s344 = sadd.s32 %s342, %s343
      %s345 = smul.addr %s344, 4
      %s346 = scalar_lea.vmem %s0, %s345
      %s347 = smul.u32 2, %s23
      %p348 = scmp.lt.s32.totalorder %s22, 1
      %s349 = scalar_select %p348, %s22, 1
      %s350 = smul.addr %s349, 5
      %s351 = smul.addr %s350, 4
      %s352 = scalar_lea.vmem %s1, %s351
      %s353 = smul.u32 2, %s23
      %p354 = scmp.lt.s32.totalorder %s22, 1
      %s355 = scalar_select %p354, %s22, 1
      %p356 = scmp.lt.s32.totalorder %s353, 1
      %s357 = scalar_select %p356, %s353, 1
      %s358 = smul.addr %s355, 2
      %s359 = sadd.s32 %s357, %s358
      %s360 = scalar_lea.vmem %s2, %s359
      %s361 = smul.u32 2, %s23
      %s362 = smul.u32 2, %s23
      %p363 = scmp.lt.s32.totalorder %s22, 1
      %s364 = scalar_select %p363, %s22, 1
      %p365 = scmp.lt.s32.totalorder %s362, 1
      %s366 = scalar_select %p365, %s362, 1
      %s367 = smul.addr %s366, 6
      %s368 = smul.addr %s364, 12
      %s369 = sadd.s32 %s367, %s368
      %s370 = smul.addr %s369, 4
      %s371 = scalar_lea.vmem %s7, %s370
      %s372 = smul.u32 2, %s23
      %v374 = vld [vmem:[%s346] sm:$0xf]
      %v375 = vld [vmem:[%s346 + $0x4] sm:$0xf]
      %v376 = vld [vmem:[%s352] sm:$0xf]
      %v377 = vld [vmem:[%s352 + $0x4] sm:$0xf]
      %v378 = vld [vmem:[%s352 + $0x8] sm:$0xf]
      %v379 = vld [vmem:[%s352 + $0xc] sm:$0xf]
      %v380 = vld [vmem:[%s352 + $0x10] sm:$0xf]
      %v386 = vunpack.c.l.b16 %v376
      %v387 = vunpack.c.l.b16 %v377
      %v388 = vunpack.c.l.b16 %v378
      %v389 = vunpack.c.l.b16 %v379
      %v390 = vunpack.c.l.b16 %v380
      %v391 = vpack.c.b16 %v386, %v386
      %v392 = vpack.c.b16 %v388, %v387
      %v393 = vpack.c.b16 %v390, %v389
      %vm396 = vcmask 1043456
      %v399 = vsel %vm396, %v374, %v391
      %v402 = vsel %vm396, %v375, %v391
      %v404 = vld [vmem:[%s360] sm:$0x1]
      %v405 = vld [vmem:[%s360 + $0x1] sm:$0x1]
      %v406 = vld [vmem:[%s3] sm:$0xf]
      %v407 = vld [vmem:[%s3 + $0x4] sm:$0xf]
      %v408 = vld [vmem:[%s3 + $0x8] sm:$0xf]
      %v409 = vld [vmem:[%s3 + $0xc] sm:$0xf]
      %v414 = vunpack.c.l.b16 %v406
      %v415 = vunpack.c.l.b16 %v407
      %v416 = vunpack.c.l.b16 %v408
      %v417 = vunpack.c.l.b16 %v409
      %v418 = vpack.c.b16 %v415, %v414
      %v419 = vpack.c.b16 %v417, %v416
      %vm422 = vcmask 261120
      %v423 = vsel %vm422, %v399, 0
      %v426 = vsel %vm422, %v392, 0
      %v429 = vsel %vm422, %v393, 0
      %v431 = vsel %vm422, %v402, 0
      %433 = vmatprep.subr.bf16.mxu0 0
      %434 = vmatpush1.bf16.msra.mxu0 0
      %435 = vmatprep.subr.bf16.mxu0 0
      %436 = vmatpush1.bf16.msra.mxu0 0
      %437 = vmatprep.subr.bf16.mxu0 0
      %438 = vmatpush1.bf16.msra.mxu0 0
      %439 = vmatprep.subr.bf16.mxu0 0
      %440 = vmatpush1.bf16.msra.mxu0 0
      %441 = vmatprep.subr.bf16.mxu0 0
      %442 = vmatpush1.bf16.msra.mxu0 0
      %443 = vmatprep.subr.bf16.mxu0 0
      %444 = vmatpush1.bf16.msra.mxu0 0
      %445 = vmatprep.subr.bf16.mxu0 0
      %446 = vmatpush1.bf16.msra.mxu0 %v419
      %447 = vmatprep.subr.bf16.mxu0 0
      %448 = vmatpush1.bf16.msra.mxu0 %v418
      %449 = vmatprep.subr.bf16.mxu0 0
      %450 = vmatpush2.bf16.msra.mxu0 0
      %451 = vmatprep.subr.bf16.mxu0 0
      %452 = vmatpush2.bf16.msra.mxu0 0
      %453 = vmatprep.subr.bf16.mxu0 0
      %454 = vmatpush2.bf16.msra.mxu0 0
      %455 = vmatprep.subr.bf16.mxu0 0
      %456 = vmatpush2.bf16.msra.mxu0 0
      %457 = vmatprep.subr.bf16.mxu0 0
      %458 = vmatpush2.bf16.msra.mxu0 0
      %459 = vmatprep.subr.bf16.mxu0 0
      %460 = vmatpush2.bf16.msra.mxu0 0
      %461 = vmatprep.subr.bf16.mxu0 0
      %462 = vmatpush2.bf16.msra.mxu0 0
      %463 = vmatprep.subr.bf16.mxu0 0
      %464 = vmatpush2.bf16.msra.mxu0 0
      %465 = vmatprep.mubr.bf16.mxu0 0
      %466 = vmatmul.mubr.bf16.gmra.mxu0 %v423
      %v467 = vpop.f32.mrf.mxu0
      %v468 = vadd.f32 0.0, %v467
      %v469 = vpop.f32.mrf.mxu0
      %v470 = vpop.f32.mrf.mxu0
      %v471 = vadd.f32 0.0, %v470
      %v472 = vpop.f32.mrf.mxu0
      %473 = vmatprep.mubr.bf16.mxu0 0
      %474 = vmatmul.mubr.bf16.gmra.mxu0 %v426
      %v475 = vpop.f32.mrf.mxu0
      %v476 = vadd.f32 0.0, %v475
      %v477 = vpop.f32.mrf.mxu0
      %v478 = vpop.f32.mrf.mxu0
      %v479 = vadd.f32 0.0, %v478
      %v480 = vpop.f32.mrf.mxu0
      %481 = vmatprep.mubr.bf16.mxu0 0
      %482 = vmatmul.mubr.bf16.gmra.mxu0 %v429
      %v483 = vpop.f32.mrf.mxu0
      %v484 = vadd.f32 0.0, %v483
      %v485 = vpop.f32.mrf.mxu0
      %v486 = vpop.f32.mrf.mxu0
      %v487 = vadd.f32 0.0, %v486
      %v488 = vpop.f32.mrf.mxu0
      %489 = vmatprep.mubr.bf16.mxu0 0
      %490 = vmatmul.mubr.bf16.gmra.mxu0 %v431
      %v491 = vpop.f32.mrf.mxu0
      %v492 = vadd.f32 0.0, %v491
      %v493 = vpop.f32.mrf.mxu0
      %v494 = vpop.f32.mrf.mxu0
      %v495 = vadd.f32 0.0, %v494
      %v496 = vpop.f32.mrf.mxu0
      %497 = vmatprep.mubr.bf16.mxu0 0
      %498 = vmatmul.mubr.bf16.gmra.mxu0 %v426
      %v499 = vpop.f32.mrf.mxu0
      %v500 = vadd.f32 0.0, %v499
      %v501 = vpop.f32.mrf.mxu0
      %v502 = vpop.f32.mrf.mxu0
      %v503 = vadd.f32 0.0, %v502
      %v504 = vpop.f32.mrf.mxu0
      %505 = vmatprep.mubr.bf16.mxu0 0
      %506 = vmatmul.mubr.bf16.gmra.mxu0 %v429
      %v507 = vpop.f32.mrf.mxu0
      %v508 = vadd.f32 0.0, %v507
      %v509 = vpop.f32.mrf.mxu0
      %v510 = vpop.f32.mrf.mxu0
      %v511 = vadd.f32 0.0, %v510
      %v512 = vpop.f32.mrf.mxu0
      %513 = vdwg.mxu0
      %v514 = vpack.c.bf16 %v471, %v468
      %v515 = vpack.c.bf16 %v479, %v476
      %v516 = vpack.c.bf16 %v487, %v484
      %v517 = vpack.c.bf16 %v495, %v492
      %v518 = vpack.c.bf16 %v503, %v500
      %v519 = vpack.c.bf16 %v511, %v508
      %523 = vrot.lane.b32.xlu0 %v514, 96
      %v524 = vpop.permute.xlu0 %523
      %525 = vrot.lane.b32.xlu0 %v515, 96
      %v526 = vpop.permute.xlu0 %525
      %527 = vrot.lane.b32.xlu0 %v516, 96
      %v528 = vpop.permute.xlu0 %527
      %v530 = vsel %vm422, %v514, 0
      %v533 = vsel %vm422, %v515, 0
      %v536 = vsel %vm422, %v516, 0
      %v539 = vsel %vm422, %v524, 0
      %v542 = vsel %vm422, %v526, 0
      %v545 = vsel %vm422, %v528, 0
      %547 = vmatprep.subr.bf16.mxu0 0
      %548 = vmatpush1.bf16.xpose.msra.mxu0 0
      %549 = vmatprep.subr.bf16.mxu0 0
      %550 = vmatpush1.bf16.xpose.msra.mxu0 0
      %551 = vmatprep.subr.bf16.mxu0 0
      %552 = vmatpush1.bf16.xpose.msra.mxu0 0
      %553 = vmatprep.subr.bf16.mxu0 0
      %554 = vmatpush1.bf16.xpose.msra.mxu0 0
      %555 = vmatprep.subr.bf16.mxu0 0
      %556 = vmatpush1.bf16.xpose.msra.mxu0 0
      %557 = vmatprep.subr.bf16.mxu0 0
      %558 = vmatpush1.bf16.xpose.msra.mxu0 %v545
      %559 = vmatprep.subr.bf16.mxu0 0
      %560 = vmatpush1.bf16.xpose.msra.mxu0 %v542
      %561 = vmatprep.subr.bf16.mxu0 0
      %562 = vmatpush1.bf16.xpose.msra.mxu0 %v539
      %563 = vmatprep.subr.bf16.mxu0 0
      %564 = vmatpush2.bf16.xpose.msra.mxu0 0
      %565 = vmatprep.subr.bf16.mxu0 0
      %566 = vmatpush2.bf16.xpose.msra.mxu0 0
      %567 = vmatprep.subr.bf16.mxu0 0
      %568 = vmatpush2.bf16.xpose.msra.mxu0 0
      %569 = vmatprep.subr.bf16.mxu0 0
      %570 = vmatpush2.bf16.xpose.msra.mxu0 0
      %571 = vmatprep.subr.bf16.mxu0 0
      %572 = vmatpush2.bf16.xpose.msra.mxu0 0
      %573 = vmatprep.subr.bf16.mxu0 0
      %574 = vmatpush2.bf16.xpose.msra.mxu0 0
      %575 = vmatprep.subr.bf16.mxu0 0
      %576 = vmatpush2.bf16.xpose.msra.mxu0 0
      %577 = vmatprep.subr.bf16.mxu0 0
      %578 = vmatpush2.bf16.xpose.msra.mxu0 0
      %579 = vmatprep.mubr.bf16.mxu0 0
      %580 = vmatmul.mubr.bf16.gmra.mxu0 %v530
      %v581 = vpop.f32.mrf.mxu0
      %v582 = vadd.f32 0.0, %v581
      %v583 = vpop.f32.mrf.mxu0
      %v584 = vpop.f32.mrf.mxu0
      %v585 = vadd.f32 0.0, %v584
      %v586 = vpop.f32.mrf.mxu0
      %587 = vmatprep.mubr.bf16.mxu0 0
      %588 = vmatmul.mubr.bf16.gmra.mxu0 %v533
      %v589 = vpop.f32.mrf.mxu0
      %v590 = vadd.f32 0.0, %v589
      %v591 = vpop.f32.mrf.mxu0
      %v592 = vpop.f32.mrf.mxu0
      %v593 = vadd.f32 0.0, %v592
      %v594 = vpop.f32.mrf.mxu0
      %595 = vmatprep.mubr.bf16.mxu0 0
      %596 = vmatmul.mubr.bf16.gmra.mxu0 %v536
      %v597 = vpop.f32.mrf.mxu0
      %v598 = vadd.f32 0.0, %v597
      %v599 = vpop.f32.mrf.mxu0
      %v600 = vpop.f32.mrf.mxu0
      %v601 = vadd.f32 0.0, %v600
      %v602 = vpop.f32.mrf.mxu0
      %603 = vdwg.mxu0
      %607 = vrot.lane.b32.xlu0 %v517, 96
      %v608 = vpop.permute.xlu0 %607
      %609 = vrot.lane.b32.xlu0 %v518, 96
      %v610 = vpop.permute.xlu0 %609
      %611 = vrot.lane.b32.xlu0 %v519, 96
      %v612 = vpop.permute.xlu0 %611
      %v614 = vsel %vm422, %v517, 0
      %v617 = vsel %vm422, %v518, 0
      %v620 = vsel %vm422, %v519, 0
      %v623 = vsel %vm422, %v608, 0
      %v626 = vsel %vm422, %v610, 0
      %v629 = vsel %vm422, %v612, 0
      %631 = vmatprep.subr.bf16.mxu0 0
      %632 = vmatpush1.bf16.xpose.msra.mxu0 0
      %633 = vmatprep.subr.bf16.mxu0 0
      %634 = vmatpush1.bf16.xpose.msra.mxu0 0
      %635 = vmatprep.subr.bf16.mxu0 0
      %636 = vmatpush1.bf16.xpose.msra.mxu0 0
      %637 = vmatprep.subr.bf16.mxu0 0
      %638 = vmatpush1.bf16.xpose.msra.mxu0 0
      %639 = vmatprep.subr.bf16.mxu0 0
      %640 = vmatpush1.bf16.xpose.msra.mxu0 0
      %641 = vmatprep.subr.bf16.mxu0 0
      %642 = vmatpush1.bf16.xpose.msra.mxu0 %v629
      %643 = vmatprep.subr.bf16.mxu0 0
      %644 = vmatpush1.bf16.xpose.msra.mxu0 %v626
      %645 = vmatprep.subr.bf16.mxu0 0
      %646 = vmatpush1.bf16.xpose.msra.mxu0 %v623
      %647 = vmatprep.subr.bf16.mxu0 0
      %648 = vmatpush2.bf16.xpose.msra.mxu0 0
      %649 = vmatprep.subr.bf16.mxu0 0
      %650 = vmatpush2.bf16.xpose.msra.mxu0 0
      %651 = vmatprep.subr.bf16.mxu0 0
      %652 = vmatpush2.bf16.xpose.msra.mxu0 0
      %653 = vmatprep.subr.bf16.mxu0 0
      %654 = vmatpush2.bf16.xpose.msra.mxu0 0
      %655 = vmatprep.subr.bf16.mxu0 0
      %656 = vmatpush2.bf16.xpose.msra.mxu0 0
      %657 = vmatprep.subr.bf16.mxu0 0
      %658 = vmatpush2.bf16.xpose.msra.mxu0 0
      %659 = vmatprep.subr.bf16.mxu0 0
      %660 = vmatpush2.bf16.xpose.msra.mxu0 0
      %661 = vmatprep.subr.bf16.mxu0 0
      %662 = vmatpush2.bf16.xpose.msra.mxu0 0
      %663 = vmatprep.mubr.bf16.mxu0 0
      %664 = vmatmul.mubr.bf16.gmra.mxu0 %v614
      %v665 = vpop.f32.mrf.mxu0
      %v666 = vadd.f32 0.0, %v665
      %v667 = vpop.f32.mrf.mxu0
      %v668 = vpop.f32.mrf.mxu0
      %v669 = vadd.f32 0.0, %v668
      %v670 = vpop.f32.mrf.mxu0
      %671 = vmatprep.mubr.bf16.mxu0 0
      %672 = vmatmul.mubr.bf16.gmra.mxu0 %v617
      %v673 = vpop.f32.mrf.mxu0
      %v674 = vadd.f32 0.0, %v673
      %v675 = vpop.f32.mrf.mxu0
      %v676 = vpop.f32.mrf.mxu0
      %v677 = vadd.f32 0.0, %v676
      %v678 = vpop.f32.mrf.mxu0
      %679 = vmatprep.mubr.bf16.mxu0 0
      %680 = vmatmul.mubr.bf16.gmra.mxu0 %v620
      %v681 = vpop.f32.mrf.mxu0
      %v682 = vadd.f32 0.0, %v681
      %v683 = vpop.f32.mrf.mxu0
      %v684 = vpop.f32.mrf.mxu0
      %v685 = vadd.f32 0.0, %v684
      %v686 = vpop.f32.mrf.mxu0
      %687 = vdwg.mxu0
      %v688 = vmul.f32 %v582, 0.17677669
      %v689 = vmul.f32 %v585, 0.17677669
      %v690 = vmul.f32 %v590, 0.17677669
      %v691 = vmul.f32 %v593, 0.17677669
      %v692 = vmul.f32 %v598, 0.17677669
      %v693 = vmul.f32 %v601, 0.17677669
      %v694 = vmul.f32 %v666, 0.17677669
      %v695 = vmul.f32 %v669, 0.17677669
      %v696 = vmul.f32 %v674, 0.17677669
      %v697 = vmul.f32 %v677, 0.17677669
      %v698 = vmul.f32 %v682, 0.17677669
      %v699 = vmul.f32 %v685, 0.17677669
      %v700 = vsub.f32 1.0, %v404
      %v701 = vsub.f32 1.0, %v405
      %v702 = vmul.f32 %v700, -1e+09
      %v703 = vmul.f32 %v701, -1e+09
      %v706 = vlaneseq
      %v707 = vshrl.u32 %v706, 7
      %v708 = vsub.s32 0, %v707
      %v709 = vrot.slane %v702, %v708
      %v710 = vlaneseq
      %v711 = vshrl.u32 %v710, 7
      %v712 = vsub.s32 0, %v711
      %v713 = vrot.slane %v703, %v712
      %v716 = vadd.f32 %v688, %v709
      %v717 = vadd.f32 %v689, %v709
      %v718 = vadd.f32 %v690, %v709
      %v719 = vadd.f32 %v691, %v709
      %v720 = vadd.f32 %v692, %v709
      %v721 = vadd.f32 %v693, %v709
      %v722 = vadd.f32 %v694, %v713
      %v723 = vadd.f32 %v695, %v713
      %v724 = vadd.f32 %v696, %v713
      %v725 = vadd.f32 %v697, %v713
      %v726 = vadd.f32 %v698, %v713
      %v727 = vadd.f32 %v699, %v713
      %vm728 = vcmask 392192
      %v729 = vsel %vm728, %v716, -inf
      %730 = vmax.xlane.f32.xlu0 %v729
      %v731 = vpop.xlane.xlu0 %730
      %v732 = vsel %vm728, %v717, -inf
      %733 = vmax.xlane.f32.xlu0 %v732
      %v734 = vpop.xlane.xlu0 %733
      %v735 = vsel %vm728, %v718, -inf
      %736 = vmax.xlane.f32.xlu0 %v735
      %v737 = vpop.xlane.xlu0 %736
      %v738 = vsel %vm728, %v719, -inf
      %739 = vmax.xlane.f32.xlu0 %v738
      %v740 = vpop.xlane.xlu0 %739
      %v741 = vsel %vm728, %v720, -inf
      %742 = vmax.xlane.f32.xlu0 %v741
      %v743 = vpop.xlane.xlu0 %742
      %v744 = vsel %vm728, %v721, -inf
      %745 = vmax.xlane.f32.xlu0 %v744
      %v746 = vpop.xlane.xlu0 %745
      %v747 = vsel %vm728, %v722, -inf
      %748 = vmax.xlane.f32.xlu0 %v747
      %v749 = vpop.xlane.xlu0 %748
      %v750 = vsel %vm728, %v723, -inf
      %751 = vmax.xlane.f32.xlu0 %v750
      %v752 = vpop.xlane.xlu0 %751
      %v753 = vsel %vm728, %v724, -inf
      %754 = vmax.xlane.f32.xlu0 %v753
      %v755 = vpop.xlane.xlu0 %754
      %v756 = vsel %vm728, %v725, -inf
      %757 = vmax.xlane.f32.xlu0 %v756
      %v758 = vpop.xlane.xlu0 %757
      %v759 = vsel %vm728, %v726, -inf
      %760 = vmax.xlane.f32.xlu0 %v759
      %v761 = vpop.xlane.xlu0 %760
      %v762 = vsel %vm728, %v727, -inf
      %763 = vmax.xlane.f32.xlu0 %v762
      %v764 = vpop.xlane.xlu0 %763
      %v765 = vsub.f32 %v716, %v731
      %v766 = vsub.f32 %v717, %v734
      %v767 = vsub.f32 %v718, %v737
      %v768 = vsub.f32 %v719, %v740
      %v769 = vsub.f32 %v720, %v743
      %v770 = vsub.f32 %v721, %v746
      %v771 = vsub.f32 %v722, %v749
      %v772 = vsub.f32 %v723, %v752
      %v773 = vsub.f32 %v724, %v755
      %v774 = vsub.f32 %v725, %v758
      %v775 = vsub.f32 %v726, %v761
      %v776 = vsub.f32 %v727, %v764
      %v777 = vmul.f32 %v765, 1.442695
      %v778 = vpow.pop %v777
      %v779 = vmul.f32 %v766, 1.442695
      %v780 = vpow.pop %v779
      %v781 = vmul.f32 %v767, 1.442695
      %v782 = vpow.pop %v781
      %v783 = vmul.f32 %v768, 1.442695
      %v784 = vpow.pop %v783
      %v785 = vmul.f32 %v769, 1.442695
      %v786 = vpow.pop %v785
      %v787 = vmul.f32 %v770, 1.442695
      %v788 = vpow.pop %v787
      %v789 = vmul.f32 %v771, 1.442695
      %v790 = vpow.pop %v789
      %v791 = vmul.f32 %v772, 1.442695
      %v792 = vpow.pop %v791
      %v793 = vmul.f32 %v773, 1.442695
      %v794 = vpow.pop %v793
      %v795 = vmul.f32 %v774, 1.442695
      %v796 = vpow.pop %v795
      %v797 = vmul.f32 %v775, 1.442695
      %v798 = vpow.pop %v797
      %v799 = vmul.f32 %v776, 1.442695
      %v800 = vpow.pop %v799
      %v801 = vsel %vm728, %v778, 0.0
      %802 = vadd.xlane.f32.xlu0 %v801
      %v803 = vpop.xlane.xlu0 %802
      %v804 = vsel %vm728, %v780, 0.0
      %805 = vadd.xlane.f32.xlu0 %v804
      %v806 = vpop.xlane.xlu0 %805
      %v807 = vsel %vm728, %v782, 0.0
      %808 = vadd.xlane.f32.xlu0 %v807
      %v809 = vpop.xlane.xlu0 %808
      %v810 = vsel %vm728, %v784, 0.0
      %811 = vadd.xlane.f32.xlu0 %v810
      %v812 = vpop.xlane.xlu0 %811
      %v813 = vsel %vm728, %v786, 0.0
      %814 = vadd.xlane.f32.xlu0 %v813
      %v815 = vpop.xlane.xlu0 %814
      %v816 = vsel %vm728, %v788, 0.0
      %817 = vadd.xlane.f32.xlu0 %v816
      %v818 = vpop.xlane.xlu0 %817
      %v819 = vsel %vm728, %v790, 0.0
      %820 = vadd.xlane.f32.xlu0 %v819
      %v821 = vpop.xlane.xlu0 %820
      %v822 = vsel %vm728, %v792, 0.0
      %823 = vadd.xlane.f32.xlu0 %v822
      %v824 = vpop.xlane.xlu0 %823
      %v825 = vsel %vm728, %v794, 0.0
      %826 = vadd.xlane.f32.xlu0 %v825
      %v827 = vpop.xlane.xlu0 %826
      %v828 = vsel %vm728, %v796, 0.0
      %829 = vadd.xlane.f32.xlu0 %v828
      %v830 = vpop.xlane.xlu0 %829
      %v831 = vsel %vm728, %v798, 0.0
      %832 = vadd.xlane.f32.xlu0 %v831
      %v833 = vpop.xlane.xlu0 %832
      %v834 = vsel %vm728, %v800, 0.0
      %835 = vadd.xlane.f32.xlu0 %v834
      %v836 = vpop.xlane.xlu0 %835
      %v837 = vrcp.pop %v803
      %v838 = vrcp.pop %v806
      %v839 = vrcp.pop %v809
      %v840 = vrcp.pop %v812
      %v841 = vrcp.pop %v815
      %v842 = vrcp.pop %v818
      %v843 = vrcp.pop %v821
      %v844 = vrcp.pop %v824
      %v845 = vrcp.pop %v827
      %v846 = vrcp.pop %v830
      %v847 = vrcp.pop %v833
      %v848 = vrcp.pop %v836
      %v849 = vmul.f32 %v778, %v837
      %v850 = vmul.f32 %v780, %v838
      %v851 = vmul.f32 %v782, %v839
      %v852 = vmul.f32 %v784, %v840
      %v853 = vmul.f32 %v786, %v841
      %v854 = vmul.f32 %v788, %v842
      %v855 = vmul.f32 %v790, %v843
      %v856 = vmul.f32 %v792, %v844
      %v857 = vmul.f32 %v794, %v845
      %v858 = vmul.f32 %v796, %v846
      %v859 = vmul.f32 %v798, %v847
      %v860 = vmul.f32 %v800, %v848
      %v861 = vpack.c.bf16 %v850, %v849
      %v862 = vpack.c.bf16 %v852, %v851
      %v863 = vpack.c.bf16 %v854, %v853
      %v864 = vpack.c.bf16 %v856, %v855
      %v865 = vpack.c.bf16 %v858, %v857
      %v866 = vpack.c.bf16 %v860, %v859
      %867 = vrot.lane.b32.xlu0 %v514, 64
      %v868 = vpop.permute.xlu0 %867
      %869 = vrot.lane.b32.xlu0 %v515, 64
      %v870 = vpop.permute.xlu0 %869
      %871 = vrot.lane.b32.xlu0 %v516, 64
      %v872 = vpop.permute.xlu0 %871
      %v877 = vsel %vm728, %v861, 0
      %v880 = vsel %vm728, %v862, 0
      %v883 = vsel %vm728, %v863, 0
      %885 = vmatprep.subr.bf16.mxu0 0
      %886 = vmatpush1.bf16.msra.mxu0 0
      %887 = vmatprep.subr.bf16.mxu0 0
      %888 = vmatpush1.bf16.msra.mxu0 0
      %889 = vmatprep.subr.bf16.mxu0 0
      %890 = vmatpush1.bf16.msra.mxu0 0
      %891 = vmatprep.subr.bf16.mxu0 0
      %892 = vmatpush1.bf16.msra.mxu0 0
      %893 = vmatprep.subr.bf16.mxu0 0
      %894 = vmatpush1.bf16.msra.mxu0 0
      %895 = vmatprep.subr.bf16.mxu0 0
      %896 = vmatpush1.bf16.msra.mxu0 %v872
      %897 = vmatprep.subr.bf16.mxu0 0
      %898 = vmatpush1.bf16.msra.mxu0 %v870
      %899 = vmatprep.subr.bf16.mxu0 0
      %900 = vmatpush1.bf16.msra.mxu0 %v868
      %901 = vmatprep.subr.bf16.mxu0 0
      %902 = vmatpush2.bf16.msra.mxu0 0
      %903 = vmatprep.subr.bf16.mxu0 0
      %904 = vmatpush2.bf16.msra.mxu0 0
      %905 = vmatprep.subr.bf16.mxu0 0
      %906 = vmatpush2.bf16.msra.mxu0 0
      %907 = vmatprep.subr.bf16.mxu0 0
      %908 = vmatpush2.bf16.msra.mxu0 0
      %909 = vmatprep.subr.bf16.mxu0 0
      %910 = vmatpush2.bf16.msra.mxu0 0
      %911 = vmatprep.subr.bf16.mxu0 0
      %912 = vmatpush2.bf16.msra.mxu0 0
      %913 = vmatprep.subr.bf16.mxu0 0
      %914 = vmatpush2.bf16.msra.mxu0 0
      %915 = vmatprep.subr.bf16.mxu0 0
      %916 = vmatpush2.bf16.msra.mxu0 0
      %917 = vmatprep.mubr.bf16.mxu0 0
      %918 = vmatmul.mubr.bf16.gmra.mxu0 %v877
      %v919 = vpop.f32.mrf.mxu0
      %v920 = vadd.f32 0.0, %v919
      %v921 = vpop.f32.mrf.mxu0
      %v922 = vpop.f32.mrf.mxu0
      %v923 = vadd.f32 0.0, %v922
      %v924 = vpop.f32.mrf.mxu0
      %925 = vmatprep.mubr.bf16.mxu0 0
      %926 = vmatmul.mubr.bf16.gmra.mxu0 %v880
      %v927 = vpop.f32.mrf.mxu0
      %v928 = vadd.f32 0.0, %v927
      %v929 = vpop.f32.mrf.mxu0
      %v930 = vpop.f32.mrf.mxu0
      %v931 = vadd.f32 0.0, %v930
      %v932 = vpop.f32.mrf.mxu0
      %933 = vmatprep.mubr.bf16.mxu0 0
      %934 = vmatmul.mubr.bf16.gmra.mxu0 %v883
      %v935 = vpop.f32.mrf.mxu0
      %v936 = vadd.f32 0.0, %v935
      %v937 = vpop.f32.mrf.mxu0
      %v938 = vpop.f32.mrf.mxu0
      %v939 = vadd.f32 0.0, %v938
      %v940 = vpop.f32.mrf.mxu0
      %941 = vdwg.mxu0
      %942 = vrot.lane.b32.xlu0 %v517, 64
      %v943 = vpop.permute.xlu0 %942
      %944 = vrot.lane.b32.xlu0 %v518, 64
      %v945 = vpop.permute.xlu0 %944
      %946 = vrot.lane.b32.xlu0 %v519, 64
      %v947 = vpop.permute.xlu0 %946
      %v952 = vsel %vm728, %v864, 0
      %v955 = vsel %vm728, %v865, 0
      %v958 = vsel %vm728, %v866, 0
      %960 = vmatprep.subr.bf16.mxu0 0
      %961 = vmatpush1.bf16.msra.mxu0 0
      %962 = vmatprep.subr.bf16.mxu0 0
      %963 = vmatpush1.bf16.msra.mxu0 0
      %964 = vmatprep.subr.bf16.mxu0 0
      %965 = vmatpush1.bf16.msra.mxu0 0
      %966 = vmatprep.subr.bf16.mxu0 0
      %967 = vmatpush1.bf16.msra.mxu0 0
      %968 = vmatprep.subr.bf16.mxu0 0
      %969 = vmatpush1.bf16.msra.mxu0 0
      %970 = vmatprep.subr.bf16.mxu0 0
      %971 = vmatpush1.bf16.msra.mxu0 %v947
      %972 = vmatprep.subr.bf16.mxu0 0
      %973 = vmatpush1.bf16.msra.mxu0 %v945
      %974 = vmatprep.subr.bf16.mxu0 0
      %975 = vmatpush1.bf16.msra.mxu0 %v943
      %976 = vmatprep.subr.bf16.mxu0 0
      %977 = vmatpush2.bf16.msra.mxu0 0
      %978 = vmatprep.subr.bf16.mxu0 0
      %979 = vmatpush2.bf16.msra.mxu0 0
      %980 = vmatprep.subr.bf16.mxu0 0
      %981 = vmatpush2.bf16.msra.mxu0 0
      %982 = vmatprep.subr.bf16.mxu0 0
      %983 = vmatpush2.bf16.msra.mxu0 0
      %984 = vmatprep.subr.bf16.mxu0 0
      %985 = vmatpush2.bf16.msra.mxu0 0
      %986 = vmatprep.subr.bf16.mxu0 0
      %987 = vmatpush2.bf16.msra.mxu0 0
      %988 = vmatprep.subr.bf16.mxu0 0
      %989 = vmatpush2.bf16.msra.mxu0 0
      %990 = vmatprep.subr.bf16.mxu0 0
      %991 = vmatpush2.bf16.msra.mxu0 0
      %992 = vmatprep.mubr.bf16.mxu0 0
      %993 = vmatmul.mubr.bf16.gmra.mxu0 %v952
      %v994 = vpop.f32.mrf.mxu0
      %v995 = vadd.f32 0.0, %v994
      %v996 = vpop.f32.mrf.mxu0
      %v997 = vpop.f32.mrf.mxu0
      %v998 = vadd.f32 0.0, %v997
      %v999 = vpop.f32.mrf.mxu0
      %1000 = vmatprep.mubr.bf16.mxu0 0
      %1001 = vmatmul.mubr.bf16.gmra.mxu0 %v955
      %v1002 = vpop.f32.mrf.mxu0
      %v1003 = vadd.f32 0.0, %v1002
      %v1004 = vpop.f32.mrf.mxu0
      %v1005 = vpop.f32.mrf.mxu0
      %v1006 = vadd.f32 0.0, %v1005
      %v1007 = vpop.f32.mrf.mxu0
      %1008 = vmatprep.mubr.bf16.mxu0 0
      %1009 = vmatmul.mubr.bf16.gmra.mxu0 %v958
      %v1010 = vpop.f32.mrf.mxu0
      %v1011 = vadd.f32 0.0, %v1010
      %v1012 = vpop.f32.mrf.mxu0
      %v1013 = vpop.f32.mrf.mxu0
      %v1014 = vadd.f32 0.0, %v1013
      %v1015 = vpop.f32.mrf.mxu0
      %1016 = vdwg.mxu0
      %v1017 = vunpack.c.l.bf16 %v399
      %v1018 = vunpack.c.h.bf16 %v399
      %v1019 = vunpack.c.l.bf16 %v392
      %v1020 = vunpack.c.h.bf16 %v392
      %v1021 = vunpack.c.l.bf16 %v393
      %v1022 = vunpack.c.h.bf16 %v393
      %v1023 = vunpack.c.l.bf16 %v402
      %v1024 = vunpack.c.h.bf16 %v402
      %v1025 = vpack.c.bf16 %v923, %v920
      %v1026 = vpack.c.bf16 %v931, %v928
      %v1027 = vpack.c.bf16 %v939, %v936
      %v1028 = vpack.c.bf16 %v998, %v995
      %v1029 = vpack.c.bf16 %v1006, %v1003
      %v1030 = vpack.c.bf16 %v1014, %v1011
      %v1031 = vld [vmem:[%s4] sm:$0xf]
      %v1032 = vld [vmem:[%s4 + $0x4] sm:$0xf]
      %v1033 = vld [vmem:[%s4 + $0x8] sm:$0xf]
      %v1034 = vld [vmem:[%s4 + $0xc] sm:$0xf]
      %v1039 = vunpack.c.l.b16 %v1031
      %v1040 = vunpack.c.l.b16 %v1032
      %v1041 = vunpack.c.l.b16 %v1033
      %v1042 = vunpack.c.l.b16 %v1034
      %v1043 = vpack.c.b16 %v1040, %v1039
      %v1044 = vpack.c.b16 %v1042, %v1041
      %v1048 = vsel %vm422, %v1025, 0
      %v1051 = vsel %vm422, %v1026, 0
      %v1054 = vsel %vm422, %v1027, 0
      %v1057 = vsel %vm422, %v1028, 0
      %v1060 = vsel %vm422, %v1029, 0
      %v1063 = vsel %vm422, %v1030, 0
      %1065 = vmatprep.subr.bf16.mxu0 0
      %1066 = vmatpush1.bf16.msra.mxu0 0
      %1067 = vmatprep.subr.bf16.mxu0 0
      %1068 = vmatpush1.bf16.msra.mxu0 0
      %1069 = vmatprep.subr.bf16.mxu0 0
      %1070 = vmatpush1.bf16.msra.mxu0 0
      %1071 = vmatprep.subr.bf16.mxu0 0
      %1072 = vmatpush1.bf16.msra.mxu0 0
      %1073 = vmatprep.subr.bf16.mxu0 0
      %1074 = vmatpush1.bf16.msra.mxu0 0
      %1075 = vmatprep.subr.bf16.mxu0 0
      %1076 = vmatpush1.bf16.msra.mxu0 0
      %1077 = vmatprep.subr.bf16.mxu0 0
      %1078 = vmatpush1.bf16.msra.mxu0 %v1044
      %1079 = vmatprep.subr.bf16.mxu0 0
      %1080 = vmatpush1.bf16.msra.mxu0 %v1043
      %1081 = vmatprep.subr.bf16.mxu0 0
      %1082 = vmatpush2.bf16.msra.mxu0 0
      %1083 = vmatprep.subr.bf16.mxu0 0
      %1084 = vmatpush2.bf16.msra.mxu0 0
      %1085 = vmatprep.subr.bf16.mxu0 0
      %1086 = vmatpush2.bf16.msra.mxu0 0
      %1087 = vmatprep.subr.bf16.mxu0 0
      %1088 = vmatpush2.bf16.msra.mxu0 0
      %1089 = vmatprep.subr.bf16.mxu0 0
      %1090 = vmatpush2.bf16.msra.mxu0 0
      %1091 = vmatprep.subr.bf16.mxu0 0
      %1092 = vmatpush2.bf16.msra.mxu0 0
      %1093 = vmatprep.subr.bf16.mxu0 0
      %1094 = vmatpush2.bf16.msra.mxu0 0
      %1095 = vmatprep.subr.bf16.mxu0 0
      %1096 = vmatpush2.bf16.msra.mxu0 0
      %1097 = vmatprep.mubr.bf16.mxu0 0
      %1098 = vmatmul.mubr.bf16.gmra.mxu0 %v1048
      %v1099 = vpop.f32.mrf.mxu0
      %v1100 = vadd.f32 0.0, %v1099
      %v1101 = vpop.f32.mrf.mxu0
      %v1102 = vpop.f32.mrf.mxu0
      %v1103 = vadd.f32 0.0, %v1102
      %v1104 = vpop.f32.mrf.mxu0
      %1105 = vmatprep.mubr.bf16.mxu0 0
      %1106 = vmatmul.mubr.bf16.gmra.mxu0 %v1051
      %v1107 = vpop.f32.mrf.mxu0
      %v1108 = vadd.f32 0.0, %v1107
      %v1109 = vpop.f32.mrf.mxu0
      %v1110 = vpop.f32.mrf.mxu0
      %v1111 = vadd.f32 0.0, %v1110
      %v1112 = vpop.f32.mrf.mxu0
      %1113 = vmatprep.mubr.bf16.mxu0 0
      %1114 = vmatmul.mubr.bf16.gmra.mxu0 %v1054
      %v1115 = vpop.f32.mrf.mxu0
      %v1116 = vadd.f32 0.0, %v1115
      %v1117 = vpop.f32.mrf.mxu0
      %v1118 = vpop.f32.mrf.mxu0
      %v1119 = vadd.f32 0.0, %v1118
      %v1120 = vpop.f32.mrf.mxu0
      %1121 = vmatprep.mubr.bf16.mxu0 0
      %1122 = vmatmul.mubr.bf16.gmra.mxu0 %v1057
      %v1123 = vpop.f32.mrf.mxu0
      %v1124 = vadd.f32 0.0, %v1123
      %v1125 = vpop.f32.mrf.mxu0
      %v1126 = vpop.f32.mrf.mxu0
      %v1127 = vadd.f32 0.0, %v1126
      %v1128 = vpop.f32.mrf.mxu0
      %1129 = vmatprep.mubr.bf16.mxu0 0
      %1130 = vmatmul.mubr.bf16.gmra.mxu0 %v1060
      %v1131 = vpop.f32.mrf.mxu0
      %v1132 = vadd.f32 0.0, %v1131
      %v1133 = vpop.f32.mrf.mxu0
      %v1134 = vpop.f32.mrf.mxu0
      %v1135 = vadd.f32 0.0, %v1134
      %v1136 = vpop.f32.mrf.mxu0
      %1137 = vmatprep.mubr.bf16.mxu0 0
      %1138 = vmatmul.mubr.bf16.gmra.mxu0 %v1063
      %v1139 = vpop.f32.mrf.mxu0
      %v1140 = vadd.f32 0.0, %v1139
      %v1141 = vpop.f32.mrf.mxu0
      %v1142 = vpop.f32.mrf.mxu0
      %v1143 = vadd.f32 0.0, %v1142
      %v1144 = vpop.f32.mrf.mxu0
      %1145 = vdwg.mxu0
      %v1146 = vadd.f32 %v1017, %v1100
      %v1147 = vadd.f32 %v1018, %v1103
      %v1148 = vadd.f32 %v1019, %v1108
      %v1149 = vadd.f32 %v1020, %v1111
      %v1150 = vadd.f32 %v1021, %v1116
      %v1151 = vadd.f32 %v1022, %v1119
      %v1152 = vadd.f32 %v1023, %v1124
      %v1153 = vadd.f32 %v1024, %v1127
      %v1154 = vadd.f32 %v1019, %v1132
      %v1155 = vadd.f32 %v1020, %v1135
      %v1156 = vadd.f32 %v1021, %v1140
      %v1157 = vadd.f32 %v1022, %v1143
      %v1158 = vpack.c.bf16 %v1147, %v1146
      %v1159 = vpack.c.bf16 %v1149, %v1148
      %v1160 = vpack.c.bf16 %v1151, %v1150
      %v1161 = vpack.c.bf16 %v1153, %v1152
      %v1162 = vpack.c.bf16 %v1155, %v1154
      %v1163 = vpack.c.bf16 %v1157, %v1156
      %v1164 = vld [vmem:[%s5] sm:$0xf]
      %v1165 = vld [vmem:[%s5 + $0x4] sm:$0xf]
      %v1166 = vld [vmem:[%s5 + $0x8] sm:$0xf]
      %v1167 = vld [vmem:[%s5 + $0xc] sm:$0xf]
      %v1172 = vunpack.c.l.b16 %v1164
      %v1173 = vunpack.c.l.b16 %v1165
      %v1174 = vunpack.c.l.b16 %v1166
      %v1175 = vunpack.c.l.b16 %v1167
      %v1176 = vpack.c.b16 %v1173, %v1172
      %v1177 = vpack.c.b16 %v1175, %v1174
      %v1181 = vsel %vm422, %v1158, 0
      %v1184 = vsel %vm422, %v1159, 0
      %v1187 = vsel %vm422, %v1160, 0
      %v1190 = vsel %vm422, %v1161, 0
      %v1193 = vsel %vm422, %v1162, 0
      %v1196 = vsel %vm422, %v1163, 0
      %1198 = vmatprep.subr.bf16.mxu0 0
      %1199 = vmatpush1.bf16.msra.mxu0 0
      %1200 = vmatprep.subr.bf16.mxu0 0
      %1201 = vmatpush1.bf16.msra.mxu0 0
      %1202 = vmatprep.subr.bf16.mxu0 0
      %1203 = vmatpush1.bf16.msra.mxu0 0
      %1204 = vmatprep.subr.bf16.mxu0 0
      %1205 = vmatpush1.bf16.msra.mxu0 0
      %1206 = vmatprep.subr.bf16.mxu0 0
      %1207 = vmatpush1.bf16.msra.mxu0 0
      %1208 = vmatprep.subr.bf16.mxu0 0
      %1209 = vmatpush1.bf16.msra.mxu0 0
      %1210 = vmatprep.subr.bf16.mxu0 0
      %1211 = vmatpush1.bf16.msra.mxu0 %v1177
      %1212 = vmatprep.subr.bf16.mxu0 0
      %1213 = vmatpush1.bf16.msra.mxu0 %v1176
      %1214 = vmatprep.subr.bf16.mxu0 0
      %1215 = vmatpush2.bf16.msra.mxu0 0
      %1216 = vmatprep.subr.bf16.mxu0 0
      %1217 = vmatpush2.bf16.msra.mxu0 0
      %1218 = vmatprep.subr.bf16.mxu0 0
      %1219 = vmatpush2.bf16.msra.mxu0 0
      %1220 = vmatprep.subr.bf16.mxu0 0
      %1221 = vmatpush2.bf16.msra.mxu0 0
      %1222 = vmatprep.subr.bf16.mxu0 0
      %1223 = vmatpush2.bf16.msra.mxu0 0
      %1224 = vmatprep.subr.bf16.mxu0 0
      %1225 = vmatpush2.bf16.msra.mxu0 0
      %1226 = vmatprep.subr.bf16.mxu0 0
      %1227 = vmatpush2.bf16.msra.mxu0 0
      %1228 = vmatprep.subr.bf16.mxu0 0
      %1229 = vmatpush2.bf16.msra.mxu0 0
      %1230 = vmatprep.mubr.bf16.mxu0 0
      %1231 = vmatmul.mubr.bf16.gmra.mxu0 %v1181
      %v1232 = vpop.f32.mrf.mxu0
      %v1233 = vadd.f32 0.0, %v1232
      %v1234 = vpop.f32.mrf.mxu0
      %v1235 = vpop.f32.mrf.mxu0
      %v1236 = vadd.f32 0.0, %v1235
      %v1237 = vpop.f32.mrf.mxu0
      %1238 = vmatprep.mubr.bf16.mxu0 0
      %1239 = vmatmul.mubr.bf16.gmra.mxu0 %v1184
      %v1240 = vpop.f32.mrf.mxu0
      %v1241 = vadd.f32 0.0, %v1240
      %v1242 = vpop.f32.mrf.mxu0
      %v1243 = vpop.f32.mrf.mxu0
      %v1244 = vadd.f32 0.0, %v1243
      %v1245 = vpop.f32.mrf.mxu0
      %1246 = vmatprep.mubr.bf16.mxu0 0
      %1247 = vmatmul.mubr.bf16.gmra.mxu0 %v1187
      %v1248 = vpop.f32.mrf.mxu0
      %v1249 = vadd.f32 0.0, %v1248
      %v1250 = vpop.f32.mrf.mxu0
      %v1251 = vpop.f32.mrf.mxu0
      %v1252 = vadd.f32 0.0, %v1251
      %v1253 = vpop.f32.mrf.mxu0
      %1254 = vmatprep.mubr.bf16.mxu0 0
      %1255 = vmatmul.mubr.bf16.gmra.mxu0 %v1190
      %v1256 = vpop.f32.mrf.mxu0
      %v1257 = vadd.f32 0.0, %v1256
      %v1258 = vpop.f32.mrf.mxu0
      %v1259 = vpop.f32.mrf.mxu0
      %v1260 = vadd.f32 0.0, %v1259
      %v1261 = vpop.f32.mrf.mxu0
      %1262 = vmatprep.mubr.bf16.mxu0 0
      %1263 = vmatmul.mubr.bf16.gmra.mxu0 %v1193
      %v1264 = vpop.f32.mrf.mxu0
      %v1265 = vadd.f32 0.0, %v1264
      %v1266 = vpop.f32.mrf.mxu0
      %v1267 = vpop.f32.mrf.mxu0
      %v1268 = vadd.f32 0.0, %v1267
      %v1269 = vpop.f32.mrf.mxu0
      %1270 = vmatprep.mubr.bf16.mxu0 0
      %1271 = vmatmul.mubr.bf16.gmra.mxu0 %v1196
      %v1272 = vpop.f32.mrf.mxu0
      %v1273 = vadd.f32 0.0, %v1272
      %v1274 = vpop.f32.mrf.mxu0
      %v1275 = vpop.f32.mrf.mxu0
      %v1276 = vadd.f32 0.0, %v1275
      %v1277 = vpop.f32.mrf.mxu0
      %1278 = vdwg.mxu0
      %v1279 = vmax.f32 %v1233, 0.0
      %v1280 = vmax.f32 %v1236, 0.0
      %v1281 = vmax.f32 %v1241, 0.0
      %v1282 = vmax.f32 %v1244, 0.0
      %v1283 = vmax.f32 %v1249, 0.0
      %v1284 = vmax.f32 %v1252, 0.0
      %v1285 = vmax.f32 %v1257, 0.0
      %v1286 = vmax.f32 %v1260, 0.0
      %v1287 = vmax.f32 %v1265, 0.0
      %v1288 = vmax.f32 %v1268, 0.0
      %v1289 = vmax.f32 %v1273, 0.0
      %v1290 = vmax.f32 %v1276, 0.0
      %v1291 = vpack.c.bf16 %v1280, %v1279
      %v1292 = vpack.c.bf16 %v1282, %v1281
      %v1293 = vpack.c.bf16 %v1284, %v1283
      %v1294 = vpack.c.bf16 %v1286, %v1285
      %v1295 = vpack.c.bf16 %v1288, %v1287
      %v1296 = vpack.c.bf16 %v1290, %v1289
      %v1297 = vld [vmem:[%s6] sm:$0xf]
      %v1298 = vld [vmem:[%s6 + $0x4] sm:$0xf]
      %v1299 = vld [vmem:[%s6 + $0x8] sm:$0xf]
      %v1300 = vld [vmem:[%s6 + $0xc] sm:$0xf]
      %v1301 = vld [vmem:[%s6 + $0x10] sm:$0xf]
      %v1302 = vld [vmem:[%s6 + $0x14] sm:$0xf]
      %v1303 = vld [vmem:[%s6 + $0x18] sm:$0xf]
      %v1304 = vld [vmem:[%s6 + $0x1c] sm:$0xf]
      %v1313 = vunpack.c.l.b16 %v1297
      %v1314 = vunpack.c.l.b16 %v1298
      %v1315 = vunpack.c.l.b16 %v1299
      %v1316 = vunpack.c.l.b16 %v1300
      %v1317 = vunpack.c.l.b16 %v1301
      %v1318 = vunpack.c.l.b16 %v1302
      %v1319 = vunpack.c.l.b16 %v1303
      %v1320 = vunpack.c.l.b16 %v1304
      %v1321 = vpack.c.b16 %v1314, %v1313
      %v1322 = vpack.c.b16 %v1316, %v1315
      %v1323 = vpack.c.b16 %v1318, %v1317
      %v1324 = vpack.c.b16 %v1320, %v1319
      %vm1329 = vcmask 523264
      %v1331 = vsel %vm1329, %v1291, 0
      %v1334 = vsel %vm1329, %v1292, 0
      %v1337 = vsel %vm1329, %v1293, 0
      %v1340 = vsel %vm1329, %v1294, 0
      %v1343 = vsel %vm1329, %v1295, 0
      %v1346 = vsel %vm1329, %v1296, 0
      %1348 = vmatprep.subr.bf16.mxu0 0
      %1349 = vmatpush1.bf16.msra.mxu0 0
      %1350 = vmatprep.subr.bf16.mxu0 0
      %1351 = vmatpush1.bf16.msra.mxu0 0
      %1352 = vmatprep.subr.bf16.mxu0 0
      %1353 = vmatpush1.bf16.msra.mxu0 0
      %1354 = vmatprep.subr.bf16.mxu0 0
      %1355 = vmatpush1.bf16.msra.mxu0 0
      %1356 = vmatprep.subr.bf16.mxu0 0
      %1357 = vmatpush1.bf16.msra.mxu0 %v1324
      %1358 = vmatprep.subr.bf16.mxu0 0
      %1359 = vmatpush1.bf16.msra.mxu0 %v1323
      %1360 = vmatprep.subr.bf16.mxu0 0
      %1361 = vmatpush1.bf16.msra.mxu0 %v1322
      %1362 = vmatprep.subr.bf16.mxu0 0
      %1363 = vmatpush1.bf16.msra.mxu0 %v1321
      %1364 = vmatprep.subr.bf16.mxu0 0
      %1365 = vmatpush2.bf16.msra.mxu0 0
      %1366 = vmatprep.subr.bf16.mxu0 0
      %1367 = vmatpush2.bf16.msra.mxu0 0
      %1368 = vmatprep.subr.bf16.mxu0 0
      %1369 = vmatpush2.bf16.msra.mxu0 0
      %1370 = vmatprep.subr.bf16.mxu0 0
      %1371 = vmatpush2.bf16.msra.mxu0 0
      %1372 = vmatprep.subr.bf16.mxu0 0
      %1373 = vmatpush2.bf16.msra.mxu0 0
      %1374 = vmatprep.subr.bf16.mxu0 0
      %1375 = vmatpush2.bf16.msra.mxu0 0
      %1376 = vmatprep.subr.bf16.mxu0 0
      %1377 = vmatpush2.bf16.msra.mxu0 0
      %1378 = vmatprep.subr.bf16.mxu0 0
      %1379 = vmatpush2.bf16.msra.mxu0 0
      %1380 = vmatprep.mubr.bf16.mxu0 0
      %1381 = vmatmul.mubr.bf16.gmra.mxu0 %v1331
      %v1382 = vpop.f32.mrf.mxu0
      %v1383 = vadd.f32 0.0, %v1382
      %v1384 = vpop.f32.mrf.mxu0
      %v1385 = vpop.f32.mrf.mxu0
      %v1386 = vadd.f32 0.0, %v1385
      %v1387 = vpop.f32.mrf.mxu0
      %1388 = vmatprep.mubr.bf16.mxu0 0
      %1389 = vmatmul.mubr.bf16.gmra.mxu0 %v1334
      %v1390 = vpop.f32.mrf.mxu0
      %v1391 = vadd.f32 0.0, %v1390
      %v1392 = vpop.f32.mrf.mxu0
      %v1393 = vpop.f32.mrf.mxu0
      %v1394 = vadd.f32 0.0, %v1393
      %v1395 = vpop.f32.mrf.mxu0
      %1396 = vmatprep.mubr.bf16.mxu0 0
      %1397 = vmatmul.mubr.bf16.gmra.mxu0 %v1337
      %v1398 = vpop.f32.mrf.mxu0
      %v1399 = vadd.f32 0.0, %v1398
      %v1400 = vpop.f32.mrf.mxu0
      %v1401 = vpop.f32.mrf.mxu0
      %v1402 = vadd.f32 0.0, %v1401
      %v1403 = vpop.f32.mrf.mxu0
      %1404 = vmatprep.mubr.bf16.mxu0 0
      %1405 = vmatmul.mubr.bf16.gmra.mxu0 %v1340
      %v1406 = vpop.f32.mrf.mxu0
      %v1407 = vadd.f32 0.0, %v1406
      %v1408 = vpop.f32.mrf.mxu0
      %v1409 = vpop.f32.mrf.mxu0
      %v1410 = vadd.f32 0.0, %v1409
      %v1411 = vpop.f32.mrf.mxu0
      %1412 = vmatprep.mubr.bf16.mxu0 0
      %1413 = vmatmul.mubr.bf16.gmra.mxu0 %v1343
      %v1414 = vpop.f32.mrf.mxu0
      %v1415 = vadd.f32 0.0, %v1414
      %v1416 = vpop.f32.mrf.mxu0
      %v1417 = vpop.f32.mrf.mxu0
      %v1418 = vadd.f32 0.0, %v1417
      %v1419 = vpop.f32.mrf.mxu0
      %1420 = vmatprep.mubr.bf16.mxu0 0
      %1421 = vmatmul.mubr.bf16.gmra.mxu0 %v1346
      %v1422 = vpop.f32.mrf.mxu0
      %v1423 = vadd.f32 0.0, %v1422
      %v1424 = vpop.f32.mrf.mxu0
      %v1425 = vpop.f32.mrf.mxu0
      %v1426 = vadd.f32 0.0, %v1425
      %v1427 = vpop.f32.mrf.mxu0
      %1428 = vdwg.mxu0
      %v1429 = vadd.f32 %v1146, %v1383
      %v1430 = vadd.f32 %v1147, %v1386
      %v1431 = vadd.f32 %v1148, %v1391
      %v1432 = vadd.f32 %v1149, %v1394
      %v1433 = vadd.f32 %v1150, %v1399
      %v1434 = vadd.f32 %v1151, %v1402
      %v1435 = vadd.f32 %v1152, %v1407
      %v1436 = vadd.f32 %v1153, %v1410
      %v1437 = vadd.f32 %v1154, %v1415
      %v1438 = vadd.f32 %v1155, %v1418
      %v1439 = vadd.f32 %v1156, %v1423
      %v1440 = vadd.f32 %v1157, %v1426
      %v1441 = vpack.c.bf16 %v1430, %v1429
      %v1442 = vpack.c.bf16 %v1432, %v1431
      %v1443 = vpack.c.bf16 %v1434, %v1433
      %v1444 = vpack.c.bf16 %v1436, %v1435
      %v1445 = vpack.c.bf16 %v1438, %v1437
      %v1446 = vpack.c.bf16 %v1440, %v1439
      %v1453 = vunpack.c.l.b16 %v1441
      %v1454 = vunpack.c.h.b16 %v1441
      %v1455 = vunpack.c.l.b16 %v1442
      %v1456 = vunpack.c.h.b16 %v1442
      %v1457 = vunpack.c.l.b16 %v1443
      %v1458 = vunpack.c.h.b16 %v1443
      %v1459 = vunpack.c.l.b16 %v1444
      %v1460 = vunpack.c.h.b16 %v1444
      %v1461 = vunpack.c.l.b16 %v1445
      %v1462 = vunpack.c.h.b16 %v1445
      %v1463 = vunpack.c.l.b16 %v1446
      %v1464 = vunpack.c.h.b16 %v1446
      %v1465 = vpack.c.b16 %v1453, %v1453
      %v1466 = vpack.c.b16 %v1454, %v1454
      %v1467 = vpack.c.b16 %v1455, %v1455
      %v1468 = vpack.c.b16 %v1456, %v1456
      %v1469 = vpack.c.b16 %v1457, %v1457
      %v1470 = vpack.c.b16 %v1458, %v1458
      %v1471 = vpack.c.b16 %v1459, %v1459
      %v1472 = vpack.c.b16 %v1460, %v1460
      %v1473 = vpack.c.b16 %v1461, %v1461
      %v1474 = vpack.c.b16 %v1462, %v1462
      %v1475 = vpack.c.b16 %v1463, %v1463
      %v1476 = vpack.c.b16 %v1464, %v1464
      %vm1489 = vcmask 257024
      %1490 = vst.msk [vmem:[%s371] sm:$0xf] %vm1489, %v1465
      %1491 = vst.msk [vmem:[%s371 + $0x4] sm:$0xf] %vm1489, %v1466
      %1492 = vst.msk [vmem:[%s371 + $0x8] sm:$0xf] %vm1489, %v1467
      %1493 = vst.msk [vmem:[%s371 + $0xc] sm:$0xf] %vm1489, %v1468
      %1494 = vst.msk [vmem:[%s371 + $0x10] sm:$0xf] %vm1489, %v1469
      %1495 = vst.msk [vmem:[%s371 + $0x14] sm:$0xf] %vm1489, %v1470
      %1496 = vst.msk [vmem:[%s371 + $0x18] sm:$0xf] %vm1489, %v1471
      %1497 = vst.msk [vmem:[%s371 + $0x1c] sm:$0xf] %vm1489, %v1472
      %1498 = vst.msk [vmem:[%s371 + $0x20] sm:$0xf] %vm1489, %v1473
      %1499 = vst.msk [vmem:[%s371 + $0x24] sm:$0xf] %vm1489, %v1474
      %1500 = vst.msk [vmem:[%s371 + $0x28] sm:$0xf] %vm1489, %v1475
      %1501 = vst.msk [vmem:[%s371 + $0x2c] sm:$0xf] %vm1489, %v1476
      %s1502 = smul.u32 2, %s23
      %p1503 = scmp.lt.s32.totalorder %s22, 1
      %s1504 = scalar_select %p1503, %s22, 1
      %p1505 = scmp.lt.s32.totalorder %s1502, 1
      %s1506 = scalar_select %p1505, %s1502, 1
      %s1507 = smul.addr %s1506, 6
      %s1508 = smul.addr %s1504, 12
      %s1509 = sadd.s32 %s1507, %s1508
      %s1510 = smul.addr %s1509, 4
      %s1511 = scalar_lea.vmem %s7, %s1510
      // Predicated region
      $region49: #{encoder_wrapper_forward.3} parent=47 // pred_check
        %p1512 = pneg %p216
      $region50: #{encoder_wrapper_forward.3} parent=47 // pred_check_branch
        %1514 = sbr.rel (%p1512) target = $region52
      $region51: #{encoder_wrapper_forward.3} parent=47 // pred_region
        %s1515 = smul.u32 2, %s23
      $region52: #{encoder_wrapper_forward.3} parent=47 // pred_fallthru
        _
    $region48: #{encoder_wrapper_forward.3} parent=5 // pred_fallthru
      _
    %p1516 = scmp.le.s32.totalorder 2, %s13
    // Predicated region
    $region53: #{encoder_wrapper_forward.3} parent=5 // pred_check
      %p1517 = pneg %p1516
    $region54: #{encoder_wrapper_forward.3} parent=5 // pred_check_branch
      %1519 = sbr.rel (%p1517) target = $region56
    $region55: #{encoder_wrapper_forward.3} parent=5 // pred_region
      %s1520 = ssub.s32 %s13, 2
      // Predicated region
      $region57: #{encoder_wrapper_forward.3} parent=55 // pred_check
        %p1521 = pneg %p222
      $region58: #{encoder_wrapper_forward.3} parent=55 // pred_check_branch
        %1523 = sbr.rel (%p1521) target = $region60
      $region59: #{encoder_wrapper_forward.3} parent=55 // pred_region
        %s1524 = smul.u32 2, %s25
        %p1525 = scmp.lt.s32.totalorder %s24, 1
        %s1526 = scalar_select %p1525, %s24, 1
        %p1527 = scmp.lt.s32.totalorder %s1524, 1
        %s1528 = scalar_select %p1527, %s1524, 1
        %s1529 = smul.addr %s1528, 6
        %s1530 = smul.addr %s1526, 12
        %s1531 = sadd.s32 %s1529, %s1530
        %s1532 = smul.addr %s1531, 4
        %s1533 = scalar_lea.vmem %s7, %s1532
      $region60: #{encoder_wrapper_forward.3} parent=55 // pred_fallthru
        _
    $region56: #{encoder_wrapper_forward.3} parent=5 // pred_fallthru
      _
  $region6: #{encoder_wrapper_forward.3} parent=0 // loop_footer
    %s17 = sadd.s32 1, %s13
  $region7: #{encoder_wrapper_forward.3} parent=0 // loop_footer_branch
    %12 = sbr.rel target = $region3
  $region8: #{encoder_wrapper_forward.3} parent=0 // loop_exit
    _

</llo_original>
